<compile_context>
chip_gen: v7x
topology: tpu7x:2x2x1
jax: 0.10.0
libtpu: 0.0.40
codegen_flags: <defaults>
</compile_context>

<pallas_src>
import functools
import math

import jax
import jax.numpy as jnp
from jax.experimental import pallas as pl
from jax.experimental.pallas import tpu as pltpu

# ----------------------- small BERT-like config -----------------------
VOCAB = 128
MAX_POS = 64
TYPE_VOCAB = 2
HIDDEN = 32
NUM_HEADS = 2
HEAD_DIM = HIDDEN // NUM_HEADS
INTERMEDIATE = 64
NUM_LAYERS = 2
N_CLASSES = 3
NPAD = 128                                    # lane-dense padding for classifier output
LN_EPS = 1e-12                                # BERT LayerNorm eps
QKV_WIDTH = 2 * HIDDEN + NUM_HEADS * HIDDEN   # Q | K | V'(Wo folded) = 128 lanes


# ----------------------- in-kernel helpers (pure value math, f32) -----------------------
def _layernorm(h, g, b):
    mean = jnp.mean(h, axis=-1, keepdims=True)
    var = jnp.mean((h - mean) ** 2, axis=-1, keepdims=True)
    return (h - mean) * jax.lax.rsqrt(var + LN_EPS) * g + b


def _gelu(y):
    # TODO(synk): HF BERT uses exact erf-GELU; tanh approximation used for robust Mosaic lowering.
    c = math.sqrt(2.0 / math.pi)
    return 0.5 * y * (1.0 + jnp.tanh(c * (y + 0.044715 * y * y * y)))


# ----------------------- fused forward kernel (one batch TILE per grid step) -----------
def _bert_forward_kernel(emb_ref, bias_ref, emb_g_ref, emb_b_ref,
                         wqkv_ref, bqkv_ref, bo_ref,
                         ln1_g_ref, ln1_b_ref, wi_ref, bi_ref,
                         wo2_ref, bo2_ref, ln2_g_ref, ln2_b_ref,
                         pool_w_ref, pool_b_ref, cls_w_ref, cls_b_ref,
                         logits_ref,
                         qkv_scratch, ctx_scratch,
                         *, b_tile, seq):
    f32 = jnp.float32
    bf16 = jnp.bfloat16
    scale = 1.0 / math.sqrt(HEAD_DIM)

    # Embedding LayerNorm on the whole packed [M, H] slab (M = b_tile * seq).
    x = _layernorm(emb_ref[...], emb_g_ref[...], emb_b_ref[...])       # [M, H] f32
    bias_all = bias_ref[0]                                              # [b_tile, S] additive mask rows

    # Statically unrolled layer loop; all layer weights are VMEM-resident.
    for l in range(NUM_LAYERS):
        # ---- fused Q|K|V' projection on the packed slab: [M,32] @ [32,128] (lane-dense) ----
        qkv = jnp.dot(x.astype(bf16), wqkv_ref[l],
                      preferred_element_type=f32) + bqkv_ref[l]         # [M, 128] f32
        # Land in VMEM scratch so per-head operands are read as static ref slices
        # instead of lane-slicing a live vreg value.
        qkv_scratch[...] = qkv

        # ---- attention: static per-element loop (sublane-aligned row slices, S=8) ----
        for b in range(b_tile):
            rows = pl.ds(b * seq, seq)
            bias_b = bias_all[b:b + 1, :]                               # [1, S] -> broadcasts over queries
            attn_b = None
            for h in range(NUM_HEADS):
                q = qkv_scratch[rows, pl.ds(h * HEAD_DIM, HEAD_DIM)].astype(bf16)            # [S, dh]
                k = qkv_scratch[rows, pl.ds(HIDDEN + h * HEAD_DIM, HEAD_DIM)].astype(bf16)   # [S, dh]
                vp = qkv_scratch[rows, pl.ds(2 * HIDDEN + h * HIDDEN, HIDDEN)].astype(bf16)  # [S, H] (Wo folded in)

                sc = jax.lax.dot_general(q, k, (((1,), (1,)), ((), ())),
                                         preferred_element_type=f32) * scale + bias_b        # [S, S]
                m = jnp.max(sc, axis=-1, keepdims=True)
                p = jnp.exp(sc - m)
                denom = jnp.sum(p, axis=-1, keepdims=True)
                probs = p * pl.reciprocal(denom, approx=True)           # EUP divide
                contrib = jnp.dot(probs.astype(bf16), vp,
                                  preferred_element_type=f32)           # [S, H] (already output-projected)
                attn_b = contrib if attn_b is None else attn_b + contrib
            ctx_scratch[rows, :] = attn_b

        attn_out = ctx_scratch[...] + bo_ref[l]                         # [M, H]
        x = _layernorm(attn_out + x, ln1_g_ref[l], ln1_b_ref[l])

        # ---- feed-forward (GELU) fused with residual + LayerNorm, whole packed slab ----
        ff = jnp.dot(x.astype(bf16), wi_ref[l],
                     preferred_element_type=f32) + bi_ref[l]
        ff = _gelu(ff)
        ff = jnp.dot(ff.astype(bf16), wo2_ref[l],
                     preferred_element_type=f32) + bo2_ref[l]
        x = _layernorm(ff + x, ln2_g_ref[l], ln2_b_ref[l])

    # ---- pooler + classifier ONCE over the packed CLS rows (sublane-aligned offsets) ----
    cls = jnp.concatenate([x[b * seq:b * seq + 1, :] for b in range(b_tile)], axis=0)  # [b_tile, H]
    pooled = jnp.tanh(jnp.dot(cls.astype(bf16), pool_w_ref[...],
                              preferred_element_type=f32) + pool_b_ref[...])

    # self.drop = nn.Dropout(p=0.2): identity at inference (eval mode)
    # ---- classification head (lane-dense, padded to NPAD=128) ----
    logits = jnp.dot(pooled.astype(bf16), cls_w_ref[...],
                     preferred_element_type=f32) + cls_b_ref[...]       # [b_tile, NPAD]
    logits_ref[0] = logits


# ----------------------- parameters -----------------------
def init_params(key):
    def normal(k, shape):
        return (0.02 * jax.random.normal(k, shape)).astype(jnp.float32)

    ks = jax.random.split(key, 12)
    L, H, I = NUM_LAYERS, HIDDEN, INTERMEDIATE

    # Separate BERT-style projection weights, then fold Wo into Wv (wrapper-side precompute).
    wq = normal(ks[3], (L, H, H))
    wk = normal(ks[4], (L, H, H))
    wv = normal(ks[5], (L, H, H))
    wo = normal(ks[6], (L, H, H))
    wvp = jnp.zeros((L, H, NUM_HEADS * H), jnp.float32)
    for h in range(NUM_HEADS):
        folded = jnp.einsum("lij,ljk->lik",
                            wv[:, :, h * HEAD_DIM:(h + 1) * HEAD_DIM],
                            wo[:, h * HEAD_DIM:(h + 1) * HEAD_DIM, :])   # Wv'_h = Wv_h @ Wo_h
        wvp = wvp.at[:, :, h * H:(h + 1) * H].set(folded)
    wqkvp = jnp.concatenate([wq, wk, wvp], axis=-1)                      # (L, H, 128) lane-dense

    cls_w = normal(ks[8], (H, N_CLASSES))
    cls_w_pad = jnp.zeros((H, NPAD), jnp.float32).at[:, :N_CLASSES].set(cls_w)

    return {
        "word_emb": normal(ks[0], (VOCAB, H)),
        "pos_emb": normal(ks[1], (MAX_POS, H)),
        "type_emb": normal(ks[2], (TYPE_VOCAB, H)),
        "emb_ln_g": jnp.ones((1, H), jnp.float32),
        "emb_ln_b": jnp.zeros((1, H), jnp.float32),
        # encoder weights stacked over layers; matmul operands stored bf16
        "wqkv": wqkvp.astype(jnp.bfloat16),
        # q-bias | k-bias | per-head (bv_h @ Wo_h) — all zero for synthetic init
        "bqkv": jnp.zeros((L, 1, QKV_WIDTH), jnp.float32),
        "bo": jnp.zeros((L, 1, H), jnp.float32),
        "ln1_g": jnp.ones((L, 1, H), jnp.float32),
        "ln1_b": jnp.zeros((L, 1, H), jnp.float32),
        "wi": normal(ks[7], (L, H, I)).astype(jnp.bfloat16),
        "bi": jnp.zeros((L, 1, I), jnp.float32),
        "wo2": normal(ks[9], (L, I, H)).astype(jnp.bfloat16),
        "bo2": jnp.zeros((L, 1, H), jnp.float32),
        "ln2_g": jnp.ones((L, 1, H), jnp.float32),
        "ln2_b": jnp.zeros((L, 1, H), jnp.float32),
        "pool_w": normal(ks[10], (H, H)).astype(jnp.bfloat16),
        "pool_b": jnp.zeros((1, H), jnp.float32),
        "cls_w_pad": cls_w_pad.astype(jnp.bfloat16),
        "cls_b_pad": jnp.zeros((1, NPAD), jnp.float32),
    }


# ----------------------- forward pass -----------------------
def sentiment_classifier_forward(params, input_ids, attention_mask):
    B, S = input_ids.shape

    # Pack as many batch elements per grid step as the MXU likes (M = B_TILE*S <= 256);
    # for the demo the whole batch fits one step.
    max_rows = max(S, 256)
    B_TILE = max(d for d in range(1, B + 1) if B % d == 0 and d * S <= max_rows)
    n_tiles = B // B_TILE
    M = B_TILE * S

    # --- BERT embeddings (gather is XLA glue; everything else is in the fused kernel) ---
    we = jnp.take(params["word_emb"], input_ids, axis=0)                # [B,S,H]
    pe = params["pos_emb"][:S][None, :, :]                              # [1,S,H]
    te = params["type_emb"][0][None, None, :]                           # token_type_ids = 0
    emb = (we + pe + te).astype(jnp.float32).reshape(B * S, HIDDEN)     # [B*S, H]

    # Additive attention-mask bias kept as ONE row per batch element ([B, S]); the
    # broadcast against the [S, S] score matrix happens inside the kernel.
    bias = (1.0 - attention_mask.astype(jnp.float32)) * (-10000.0)      # [B, S]
    bias = bias.reshape(n_tiles, B_TILE, S)

    weight_args = (
        params["emb_ln_g"], params["emb_ln_b"],
        params["wqkv"], params["bqkv"], params["bo"],
        params["ln1_g"], params["ln1_b"], params["wi"], params["bi"],
        params["wo2"], params["bo2"], params["ln2_g"], params["ln2_b"],
        params["pool_w"], params["pool_b"], params["cls_w_pad"], params["cls_b_pad"],
    )

    # Grid-invariant weights: full blocks. (With grid==1 for the demo, buffering depth is
    # moot; at bert-base scale these would be single-buffered / layer-streamed instead.)
    def full_spec(a):
        nd = a.ndim
        return pl.BlockSpec(a.shape, lambda t, _nd=nd: (0,) * _nd)

    in_specs = [
        pl.BlockSpec((M, HIDDEN), lambda t: (t, 0)),          # packed per-tile token slab
        pl.BlockSpec((1, B_TILE, S), lambda t: (t, 0, 0)),    # per-tile additive mask rows
    ] + [full_spec(a) for a in weight_args]

    kernel = functools.partial(_bert_forward_kernel, b_tile=B_TILE, seq=S)

    out = pl.pallas_call(
        kernel,
        grid=(n_tiles,),
        in_specs=in_specs,
        out_specs=pl.BlockSpec((1, B_TILE, NPAD), lambda t: (t, 0, 0)),
        out_shape=jax.ShapeDtypeStruct((n_tiles, B_TILE, NPAD), jnp.float32),
        scratch_shapes=[
            pltpu.VMEM((M, QKV_WIDTH), jnp.float32),          # fused QKV' landing pad
            pltpu.VMEM((M, HIDDEN), jnp.float32),             # per-tile attention output
        ],
        compiler_params=pltpu.CompilerParams(
            dimension_semantics=("parallel",),                # v7x: batch tiles across TCs
            vmem_limit_bytes=32 * 1024 * 1024,
        ),
    )(emb, bias, *weight_args)

    return out.reshape(B, NPAD)[:, :N_CLASSES]


# ----------------------- demo -----------------------
if __name__ == "__main__":
    key = jax.random.PRNGKey(0)
    pkey, ikey = jax.random.split(key)
    params = init_params(pkey)

    B, S = 2, 8
    input_ids = jax.random.randint(ikey, (B, S), 0, VOCAB, dtype=jnp.int32)
    attention_mask = jnp.ones((B, S), dtype=jnp.int32)

    forward = jax.jit(sentiment_classifier_forward)
    logits = forward(params, input_ids, attention_mask)
    jax.block_until_ready(logits)
    assert logits.shape == (B, N_CLASSES)
    print("KERNEL_OK")
</pallas_src>

<mosaic_0001>
module attributes {stable_mosaic.version = 11 : i64} {
  func.func @_bert_forward_kernel(%arg0: i32, %arg1: memref<16x32xf32, #tpu.memory_space<vmem>>, %arg2: memref<1x2x8xf32, #tpu.memory_space<vmem>>, %arg3: memref<1x32xf32, #tpu.memory_space<vmem>>, %arg4: memref<1x32xf32, #tpu.memory_space<vmem>>, %arg5: memref<2x32x128xbf16, #tpu.memory_space<vmem>>, %arg6: memref<2x1x128xf32, #tpu.memory_space<vmem>>, %arg7: memref<2x1x32xf32, #tpu.memory_space<vmem>>, %arg8: memref<2x1x32xf32, #tpu.memory_space<vmem>>, %arg9: memref<2x1x32xf32, #tpu.memory_space<vmem>>, %arg10: memref<2x32x64xbf16, #tpu.memory_space<vmem>>, %arg11: memref<2x1x64xf32, #tpu.memory_space<vmem>>, %arg12: memref<2x64x32xbf16, #tpu.memory_space<vmem>>, %arg13: memref<2x1x32xf32, #tpu.memory_space<vmem>>, %arg14: memref<2x1x32xf32, #tpu.memory_space<vmem>>, %arg15: memref<2x1x32xf32, #tpu.memory_space<vmem>>, %arg16: memref<32x32xbf16, #tpu.memory_space<vmem>>, %arg17: memref<1x32xf32, #tpu.memory_space<vmem>>, %arg18: memref<32x128xbf16, #tpu.memory_space<vmem>>, %arg19: memref<1x128xf32, #tpu.memory_space<vmem>>, %arg20: memref<1x2x128xf32, #tpu.memory_space<vmem>>, %arg21: memref<16x128xf32, #tpu.memory_space<vmem>>, %arg22: memref<16x32xf32, #tpu.memory_space<vmem>>) attributes {dimension_semantics = [#tpu.dimension_semantics<parallel>], iteration_bounds = array<i64: 1>, scalar_prefetch = 0 : i64, scratch_operands = 2 : i64, tpu.core_type = #tpu.core_type<tc>, window_params = [{transform_indices = @transform_0, window_bounds = array<i64: 16, 32>}, {transform_indices = @transform_1, window_bounds = array<i64: 1, 2, 8>}, {pipeline_mode = #tpu.pipeline_mode<synchronous>, transform_indices = @transform_2, window_bounds = array<i64: 1, 32>}, {pipeline_mode = #tpu.pipeline_mode<synchronous>, transform_indices = @transform_3, window_bounds = array<i64: 1, 32>}, {pipeline_mode = #tpu.pipeline_mode<synchronous>, transform_indices = @transform_4, window_bounds = array<i64: 2, 32, 128>}, {pipeline_mode = #tpu.pipeline_mode<synchronous>, transform_indices = @transform_5, window_bounds = array<i64: 2, 1, 128>}, {pipeline_mode = #tpu.pipeline_mode<synchronous>, transform_indices = @transform_6, window_bounds = array<i64: 2, 1, 32>}, {pipeline_mode = #tpu.pipeline_mode<synchronous>, transform_indices = @transform_7, window_bounds = array<i64: 2, 1, 32>}, {pipeline_mode = #tpu.pipeline_mode<synchronous>, transform_indices = @transform_8, window_bounds = array<i64: 2, 1, 32>}, {pipeline_mode = #tpu.pipeline_mode<synchronous>, transform_indices = @transform_9, window_bounds = array<i64: 2, 32, 64>}, {pipeline_mode = #tpu.pipeline_mode<synchronous>, transform_indices = @transform_10, window_bounds = array<i64: 2, 1, 64>}, {pipeline_mode = #tpu.pipeline_mode<synchronous>, transform_indices = @transform_11, window_bounds = array<i64: 2, 64, 32>}, {pipeline_mode = #tpu.pipeline_mode<synchronous>, transform_indices = @transform_12, window_bounds = array<i64: 2, 1, 32>}, {pipeline_mode = #tpu.pipeline_mode<synchronous>, transform_indices = @transform_13, window_bounds = array<i64: 2, 1, 32>}, {pipeline_mode = #tpu.pipeline_mode<synchronous>, transform_indices = @transform_14, window_bounds = array<i64: 2, 1, 32>}, {pipeline_mode = #tpu.pipeline_mode<synchronous>, transform_indices = @transform_15, window_bounds = array<i64: 32, 32>}, {pipeline_mode = #tpu.pipeline_mode<synchronous>, transform_indices = @transform_16, window_bounds = array<i64: 1, 32>}, {pipeline_mode = #tpu.pipeline_mode<synchronous>, transform_indices = @transform_17, window_bounds = array<i64: 32, 128>}, {pipeline_mode = #tpu.pipeline_mode<synchronous>, transform_indices = @transform_18, window_bounds = array<i64: 1, 128>}, {transform_indices = @transform_19, window_bounds = array<i64: 1, 2, 128>}]} {
    %c0 = arith.constant 0 : index
    %c0_0 = arith.constant 0 : index
    %0 = vector.load %arg1[%c0, %c0_0] : memref<16x32xf32, #tpu.memory_space<vmem>>, vector<16x32xf32>
    %c0_1 = arith.constant 0 : index
    %c0_2 = arith.constant 0 : index
    %1 = vector.load %arg3[%c0_1, %c0_2] : memref<1x32xf32, #tpu.memory_space<vmem>>, vector<1x32xf32>
    %c0_3 = arith.constant 0 : index
    %c0_4 = arith.constant 0 : index
    %2 = vector.load %arg4[%c0_3, %c0_4] : memref<1x32xf32, #tpu.memory_space<vmem>>, vector<1x32xf32>
    %cst = arith.constant dense<0.000000e+00> : vector<16xf32>
    %3 = vector.multi_reduction <add>, %0, %cst [1] : vector<16x32xf32> to vector<16xf32>
    %4 = vector.shape_cast %3 : vector<16xf32> to vector<16x1xf32>
    %cst_5 = arith.constant 3.200000e+01 : f32
    %5 = vector.broadcast %cst_5 : f32 to vector<16x1xf32>
    %6 = arith.divf %4, %5 : vector<16x1xf32>
    %7 = vector.broadcast %6 : vector<16x1xf32> to vector<16x32xf32>
    %8 = arith.subf %0, %7 : vector<16x32xf32>
    %9 = arith.mulf %8, %8 : vector<16x32xf32>
    %cst_6 = arith.constant dense<0.000000e+00> : vector<16xf32>
    %10 = vector.multi_reduction <add>, %9, %cst_6 [1] : vector<16x32xf32> to vector<16xf32>
    %11 = vector.shape_cast %10 : vector<16xf32> to vector<16x1xf32>
    %cst_7 = arith.constant 3.200000e+01 : f32
    %12 = vector.broadcast %cst_7 : f32 to vector<16x1xf32>
    %13 = arith.divf %11, %12 : vector<16x1xf32>
    %14 = vector.broadcast %6 : vector<16x1xf32> to vector<16x32xf32>
    %15 = arith.subf %0, %14 : vector<16x32xf32>
    %cst_8 = arith.constant 9.99999996E-13 : f32
    %16 = vector.broadcast %cst_8 : f32 to vector<16x1xf32>
    %17 = arith.addf %13, %16 : vector<16x1xf32>
    %18 = math.rsqrt %17 : vector<16x1xf32>
    %19 = vector.broadcast %18 : vector<16x1xf32> to vector<16x32xf32>
    %20 = arith.mulf %15, %19 : vector<16x32xf32>
    %21 = vector.broadcast %1 : vector<1x32xf32> to vector<16x32xf32>
    %22 = arith.mulf %20, %21 : vector<16x32xf32>
    %23 = vector.broadcast %2 : vector<1x32xf32> to vector<16x32xf32>
    %24 = arith.addf %22, %23 : vector<16x32xf32>
    %c0_9 = arith.constant 0 : index
    %c0_10 = arith.constant 0 : index
    %c0_11 = arith.constant 0 : index
    %25 = vector.load %arg2[%c0_9, %c0_10, %c0_11] : memref<1x2x8xf32, #tpu.memory_space<vmem>>, vector<1x2x8xf32>
    %26 = vector.shape_cast %25 : vector<1x2x8xf32> to vector<2x8xf32>
    %27 = arith.truncf %24 : vector<16x32xf32> to vector<16x32xbf16>
    %c0_12 = arith.constant 0 : index
    %c0_13 = arith.constant 0 : index
    %c0_14 = arith.constant 0 : index
    %28 = vector.load %arg5[%c0_12, %c0_13, %c0_14] : memref<2x32x128xbf16, #tpu.memory_space<vmem>>, vector<1x32x128xbf16>
    %29 = vector.shape_cast %28 : vector<1x32x128xbf16> to vector<32x128xbf16>
    %cst_15 = arith.constant dense<0.000000e+00> : vector<16x128xf32>
    %30 = tpu.matmul %27, %29, %cst_15 {dimension_numbers = #tpu.dot_dimension_numbers<[1], [0], [0], [1], [0, 0, 1, 1], [], []>} : vector<16x32xbf16>, vector<32x128xbf16>, vector<16x128xf32> -> vector<16x128xf32>
    %c0_16 = arith.constant 0 : index
    %c0_17 = arith.constant 0 : index
    %c0_18 = arith.constant 0 : index
    %31 = vector.load %arg6[%c0_16, %c0_17, %c0_18] : memref<2x1x128xf32, #tpu.memory_space<vmem>>, vector<1x1x128xf32>
    %32 = vector.shape_cast %31 : vector<1x1x128xf32> to vector<1x128xf32>
    %33 = vector.broadcast %32 : vector<1x128xf32> to vector<16x128xf32>
    %34 = arith.addf %30, %33 : vector<16x128xf32>
    %c0_19 = arith.constant 0 : index
    %c0_20 = arith.constant 0 : index
    %35 = vector.load %arg21[%c0_19, %c0_20] : memref<16x128xf32, #tpu.memory_space<vmem>>, vector<16x128xf32>
    tpu.vector_store %arg21[%c0_19, %c0_20], %34 {strides = array<i32>} : memref<16x128xf32, #tpu.memory_space<vmem>>, vector<16x128xf32>,
    %36 = vector.extract_strided_slice %26 {offsets = [0, 0], sizes = [1, 8], strides = [1, 1]} : vector<2x8xf32> to vector<1x8xf32>
    %c0_21 = arith.constant 0 : index
    %c0_22 = arith.constant 0 : index
    %37 = vector.load %arg21[%c0_21, %c0_22] : memref<16x128xf32, #tpu.memory_space<vmem>>, vector<8x16xf32>
    %38 = arith.truncf %37 : vector<8x16xf32> to vector<8x16xbf16>
    %c0_23 = arith.constant 0 : index
    %c32 = arith.constant 32 : index
    %39 = vector.load %arg21[%c0_23, %c32] : memref<16x128xf32, #tpu.memory_space<vmem>>, vector<8x16xf32>
    %40 = arith.truncf %39 : vector<8x16xf32> to vector<8x16xbf16>
    %c0_24 = arith.constant 0 : index
    %c64 = arith.constant 64 : index
    %41 = vector.load %arg21[%c0_24, %c64] : memref<16x128xf32, #tpu.memory_space<vmem>>, vector<8x32xf32>
    %42 = arith.truncf %41 : vector<8x32xf32> to vector<8x32xbf16>
    %cst_25 = arith.constant dense<0.000000e+00> : vector<8x8xf32>
    %43 = tpu.matmul %38, %40, %cst_25 {dimension_numbers = #tpu.dot_dimension_numbers<[1], [1], [0], [0], [0, 0, 1, 0], [], []>} : vector<8x16xbf16>, vector<8x16xbf16>, vector<8x8xf32> -> vector<8x8xf32>
    %cst_26 = arith.constant 2.500000e-01 : f32
    %44 = vector.broadcast %cst_26 : f32 to vector<8x8xf32>
    %45 = arith.mulf %43, %44 : vector<8x8xf32>
    %46 = vector.broadcast %36 : vector<1x8xf32> to vector<8x8xf32>
    %47 = arith.addf %45, %46 : vector<8x8xf32>
    %cst_27 = arith.constant dense<0xFF800000> : vector<8xf32>
    %48 = vector.multi_reduction <maximumf>, %47, %cst_27 [1] : vector<8x8xf32> to vector<8xf32>
    %49 = vector.shape_cast %48 : vector<8xf32> to vector<8x1xf32>
    %50 = vector.broadcast %49 : vector<8x1xf32> to vector<8x8xf32>
    %51 = arith.subf %47, %50 : vector<8x8xf32>
    %52 = math.exp %51 : vector<8x8xf32>
    %cst_28 = arith.constant dense<0.000000e+00> : vector<8xf32>
    %53 = vector.multi_reduction <add>, %52, %cst_28 [1] : vector<8x8xf32> to vector<8xf32>
    %54 = vector.shape_cast %53 : vector<8xf32> to vector<8x1xf32>
    %55 = tpu.reciprocal %54 {approx = true} : vector<8x1xf32> -> vector<8x1xf32>
    %56 = vector.broadcast %55 : vector<8x1xf32> to vector<8x8xf32>
    %57 = arith.mulf %52, %56 : vector<8x8xf32>
    %58 = arith.truncf %57 : vector<8x8xf32> to vector<8x8xbf16>
    %cst_29 = arith.constant dense<0.000000e+00> : vector<8x32xf32>
    %59 = tpu.matmul %58, %42, %cst_29 {dimension_numbers = #tpu.dot_dimension_numbers<[1], [0], [0], [1], [0, 0, 1, 1], [], []>} : vector<8x8xbf16>, vector<8x32xbf16>, vector<8x32xf32> -> vector<8x32xf32>
    %c0_30 = arith.constant 0 : index
    %c16 = arith.constant 16 : index
    %60 = vector.load %arg21[%c0_30, %c16] : memref<16x128xf32, #tpu.memory_space<vmem>>, vector<8x16xf32>
    %61 = arith.truncf %60 : vector<8x16xf32> to vector<8x16xbf16>
    %c0_31 = arith.constant 0 : index
    %c48 = arith.constant 48 : index
    %62 = vector.load %arg21[%c0_31, %c48] : memref<16x128xf32, #tpu.memory_space<vmem>>, vector<8x16xf32>
    %63 = arith.truncf %62 : vector<8x16xf32> to vector<8x16xbf16>
    %c0_32 = arith.constant 0 : index
    %c96 = arith.constant 96 : index
    %64 = vector.load %arg21[%c0_32, %c96] : memref<16x128xf32, #tpu.memory_space<vmem>>, vector<8x32xf32>
    %65 = arith.truncf %64 : vector<8x32xf32> to vector<8x32xbf16>
    %cst_33 = arith.constant dense<0.000000e+00> : vector<8x8xf32>
    %66 = tpu.matmul %61, %63, %cst_33 {dimension_numbers = #tpu.dot_dimension_numbers<[1], [1], [0], [0], [0, 0, 1, 0], [], []>} : vector<8x16xbf16>, vector<8x16xbf16>, vector<8x8xf32> -> vector<8x8xf32>
    %cst_34 = arith.constant 2.500000e-01 : f32
    %67 = vector.broadcast %cst_34 : f32 to vector<8x8xf32>
    %68 = arith.mulf %66, %67 : vector<8x8xf32>
    %69 = vector.broadcast %36 : vector<1x8xf32> to vector<8x8xf32>
    %70 = arith.addf %68, %69 : vector<8x8xf32>
    %cst_35 = arith.constant dense<0xFF800000> : vector<8xf32>
    %71 = vector.multi_reduction <maximumf>, %70, %cst_35 [1] : vector<8x8xf32> to vector<8xf32>
    %72 = vector.shape_cast %71 : vector<8xf32> to vector<8x1xf32>
    %73 = vector.broadcast %72 : vector<8x1xf32> to vector<8x8xf32>
    %74 = arith.subf %70, %73 : vector<8x8xf32>
    %75 = math.exp %74 : vector<8x8xf32>
    %cst_36 = arith.constant dense<0.000000e+00> : vector<8xf32>
    %76 = vector.multi_reduction <add>, %75, %cst_36 [1] : vector<8x8xf32> to vector<8xf32>
    %77 = vector.shape_cast %76 : vector<8xf32> to vector<8x1xf32>
    %78 = tpu.reciprocal %77 {approx = true} : vector<8x1xf32> -> vector<8x1xf32>
    %79 = vector.broadcast %78 : vector<8x1xf32> to vector<8x8xf32>
    %80 = arith.mulf %75, %79 : vector<8x8xf32>
    %81 = arith.truncf %80 : vector<8x8xf32> to vector<8x8xbf16>
    %cst_37 = arith.constant dense<0.000000e+00> : vector<8x32xf32>
    %82 = tpu.matmul %81, %65, %cst_37 {dimension_numbers = #tpu.dot_dimension_numbers<[1], [0], [0], [1], [0, 0, 1, 1], [], []>} : vector<8x8xbf16>, vector<8x32xbf16>, vector<8x32xf32> -> vector<8x32xf32>
    %83 = arith.addf %59, %82 : vector<8x32xf32>
    %c0_38 = arith.constant 0 : index
    %c0_39 = arith.constant 0 : index
    %84 = vector.load %arg22[%c0_38, %c0_39] : memref<16x32xf32, #tpu.memory_space<vmem>>, vector<8x32xf32>
    tpu.vector_store %arg22[%c0_38, %c0_39], %83 {strides = array<i32>} : memref<16x32xf32, #tpu.memory_space<vmem>>, vector<8x32xf32>,
    %85 = vector.extract_strided_slice %26 {offsets = [1, 0], sizes = [1, 8], strides = [1, 1]} : vector<2x8xf32> to vector<1x8xf32>
    %c8 = arith.constant 8 : index
    %c0_40 = arith.constant 0 : index
    %86 = vector.load %arg21[%c8, %c0_40] : memref<16x128xf32, #tpu.memory_space<vmem>>, vector<8x16xf32>
    %87 = arith.truncf %86 : vector<8x16xf32> to vector<8x16xbf16>
    %c8_41 = arith.constant 8 : index
    %c32_42 = arith.constant 32 : index
    %88 = vector.load %arg21[%c8_41, %c32_42] : memref<16x128xf32, #tpu.memory_space<vmem>>, vector<8x16xf32>
    %89 = arith.truncf %88 : vector<8x16xf32> to vector<8x16xbf16>
    %c8_43 = arith.constant 8 : index
    %c64_44 = arith.constant 64 : index
    %90 = vector.load %arg21[%c8_43, %c64_44] : memref<16x128xf32, #tpu.memory_space<vmem>>, vector<8x32xf32>
    %91 = arith.truncf %90 : vector<8x32xf32> to vector<8x32xbf16>
    %cst_45 = arith.constant dense<0.000000e+00> : vector<8x8xf32>
    %92 = tpu.matmul %87, %89, %cst_45 {dimension_numbers = #tpu.dot_dimension_numbers<[1], [1], [0], [0], [0, 0, 1, 0], [], []>} : vector<8x16xbf16>, vector<8x16xbf16>, vector<8x8xf32> -> vector<8x8xf32>
    %cst_46 = arith.constant 2.500000e-01 : f32
    %93 = vector.broadcast %cst_46 : f32 to vector<8x8xf32>
    %94 = arith.mulf %92, %93 : vector<8x8xf32>
    %95 = vector.broadcast %85 : vector<1x8xf32> to vector<8x8xf32>
    %96 = arith.addf %94, %95 : vector<8x8xf32>
    %cst_47 = arith.constant dense<0xFF800000> : vector<8xf32>
    %97 = vector.multi_reduction <maximumf>, %96, %cst_47 [1] : vector<8x8xf32> to vector<8xf32>
    %98 = vector.shape_cast %97 : vector<8xf32> to vector<8x1xf32>
    %99 = vector.broadcast %98 : vector<8x1xf32> to vector<8x8xf32>
    %100 = arith.subf %96, %99 : vector<8x8xf32>
    %101 = math.exp %100 : vector<8x8xf32>
    %cst_48 = arith.constant dense<0.000000e+00> : vector<8xf32>
    %102 = vector.multi_reduction <add>, %101, %cst_48 [1] : vector<8x8xf32> to vector<8xf32>
    %103 = vector.shape_cast %102 : vector<8xf32> to vector<8x1xf32>
    %104 = tpu.reciprocal %103 {approx = true} : vector<8x1xf32> -> vector<8x1xf32>
    %105 = vector.broadcast %104 : vector<8x1xf32> to vector<8x8xf32>
    %106 = arith.mulf %101, %105 : vector<8x8xf32>
    %107 = arith.truncf %106 : vector<8x8xf32> to vector<8x8xbf16>
    %cst_49 = arith.constant dense<0.000000e+00> : vector<8x32xf32>
    %108 = tpu.matmul %107, %91, %cst_49 {dimension_numbers = #tpu.dot_dimension_numbers<[1], [0], [0], [1], [0, 0, 1, 1], [], []>} : vector<8x8xbf16>, vector<8x32xbf16>, vector<8x32xf32> -> vector<8x32xf32>
    %c8_50 = arith.constant 8 : index
    %c16_51 = arith.constant 16 : index
    %109 = vector.load %arg21[%c8_50, %c16_51] : memref<16x128xf32, #tpu.memory_space<vmem>>, vector<8x16xf32>
    %110 = arith.truncf %109 : vector<8x16xf32> to vector<8x16xbf16>
    %c8_52 = arith.constant 8 : index
    %c48_53 = arith.constant 48 : index
    %111 = vector.load %arg21[%c8_52, %c48_53] : memref<16x128xf32, #tpu.memory_space<vmem>>, vector<8x16xf32>
    %112 = arith.truncf %111 : vector<8x16xf32> to vector<8x16xbf16>
    %c8_54 = arith.constant 8 : index
    %c96_55 = arith.constant 96 : index
    %113 = vector.load %arg21[%c8_54, %c96_55] : memref<16x128xf32, #tpu.memory_space<vmem>>, vector<8x32xf32>
    %114 = arith.truncf %113 : vector<8x32xf32> to vector<8x32xbf16>
    %cst_56 = arith.constant dense<0.000000e+00> : vector<8x8xf32>
    %115 = tpu.matmul %110, %112, %cst_56 {dimension_numbers = #tpu.dot_dimension_numbers<[1], [1], [0], [0], [0, 0, 1, 0], [], []>} : vector<8x16xbf16>, vector<8x16xbf16>, vector<8x8xf32> -> vector<8x8xf32>
    %cst_57 = arith.constant 2.500000e-01 : f32
    %116 = vector.broadcast %cst_57 : f32 to vector<8x8xf32>
    %117 = arith.mulf %115, %116 : vector<8x8xf32>
    %118 = vector.broadcast %85 : vector<1x8xf32> to vector<8x8xf32>
    %119 = arith.addf %117, %118 : vector<8x8xf32>
    %cst_58 = arith.constant dense<0xFF800000> : vector<8xf32>
    %120 = vector.multi_reduction <maximumf>, %119, %cst_58 [1] : vector<8x8xf32> to vector<8xf32>
    %121 = vector.shape_cast %120 : vector<8xf32> to vector<8x1xf32>
    %122 = vector.broadcast %121 : vector<8x1xf32> to vector<8x8xf32>
    %123 = arith.subf %119, %122 : vector<8x8xf32>
    %124 = math.exp %123 : vector<8x8xf32>
    %cst_59 = arith.constant dense<0.000000e+00> : vector<8xf32>
    %125 = vector.multi_reduction <add>, %124, %cst_59 [1] : vector<8x8xf32> to vector<8xf32>
    %126 = vector.shape_cast %125 : vector<8xf32> to vector<8x1xf32>
    %127 = tpu.reciprocal %126 {approx = true} : vector<8x1xf32> -> vector<8x1xf32>
    %128 = vector.broadcast %127 : vector<8x1xf32> to vector<8x8xf32>
    %129 = arith.mulf %124, %128 : vector<8x8xf32>
    %130 = arith.truncf %129 : vector<8x8xf32> to vector<8x8xbf16>
    %cst_60 = arith.constant dense<0.000000e+00> : vector<8x32xf32>
    %131 = tpu.matmul %130, %114, %cst_60 {dimension_numbers = #tpu.dot_dimension_numbers<[1], [0], [0], [1], [0, 0, 1, 1], [], []>} : vector<8x8xbf16>, vector<8x32xbf16>, vector<8x32xf32> -> vector<8x32xf32>
    %132 = arith.addf %108, %131 : vector<8x32xf32>
    %c8_61 = arith.constant 8 : index
    %c0_62 = arith.constant 0 : index
    %133 = vector.load %arg22[%c8_61, %c0_62] : memref<16x32xf32, #tpu.memory_space<vmem>>, vector<8x32xf32>
    tpu.vector_store %arg22[%c8_61, %c0_62], %132 {strides = array<i32>} : memref<16x32xf32, #tpu.memory_space<vmem>>, vector<8x32xf32>,
    %c0_63 = arith.constant 0 : index
    %c0_64 = arith.constant 0 : index
    %134 = vector.load %arg22[%c0_63, %c0_64] : memref<16x32xf32, #tpu.memory_space<vmem>>, vector<16x32xf32>
    %c0_65 = arith.constant 0 : index
    %c0_66 = arith.constant 0 : index
    %c0_67 = arith.constant 0 : index
    %135 = vector.load %arg7[%c0_65, %c0_66, %c0_67] : memref<2x1x32xf32, #tpu.memory_space<vmem>>, vector<1x1x32xf32>
    %136 = vector.shape_cast %135 : vector<1x1x32xf32> to vector<1x32xf32>
    %137 = vector.broadcast %136 : vector<1x32xf32> to vector<16x32xf32>
    %138 = arith.addf %134, %137 : vector<16x32xf32>
    %139 = arith.addf %138, %24 : vector<16x32xf32>
    %c0_68 = arith.constant 0 : index
    %c0_69 = arith.constant 0 : index
    %c0_70 = arith.constant 0 : index
    %140 = vector.load %arg8[%c0_68, %c0_69, %c0_70] : memref<2x1x32xf32, #tpu.memory_space<vmem>>, vector<1x1x32xf32>
    %141 = vector.shape_cast %140 : vector<1x1x32xf32> to vector<1x32xf32>
    %c0_71 = arith.constant 0 : index
    %c0_72 = arith.constant 0 : index
    %c0_73 = arith.constant 0 : index
    %142 = vector.load %arg9[%c0_71, %c0_72, %c0_73] : memref<2x1x32xf32, #tpu.memory_space<vmem>>, vector<1x1x32xf32>
    %143 = vector.shape_cast %142 : vector<1x1x32xf32> to vector<1x32xf32>
    %cst_74 = arith.constant dense<0.000000e+00> : vector<16xf32>
    %144 = vector.multi_reduction <add>, %139, %cst_74 [1] : vector<16x32xf32> to vector<16xf32>
    %145 = vector.shape_cast %144 : vector<16xf32> to vector<16x1xf32>
    %cst_75 = arith.constant 3.200000e+01 : f32
    %146 = vector.broadcast %cst_75 : f32 to vector<16x1xf32>
    %147 = arith.divf %145, %146 : vector<16x1xf32>
    %148 = vector.broadcast %147 : vector<16x1xf32> to vector<16x32xf32>
    %149 = arith.subf %139, %148 : vector<16x32xf32>
    %150 = arith.mulf %149, %149 : vector<16x32xf32>
    %cst_76 = arith.constant dense<0.000000e+00> : vector<16xf32>
    %151 = vector.multi_reduction <add>, %150, %cst_76 [1] : vector<16x32xf32> to vector<16xf32>
    %152 = vector.shape_cast %151 : vector<16xf32> to vector<16x1xf32>
    %cst_77 = arith.constant 3.200000e+01 : f32
    %153 = vector.broadcast %cst_77 : f32 to vector<16x1xf32>
    %154 = arith.divf %152, %153 : vector<16x1xf32>
    %155 = vector.broadcast %147 : vector<16x1xf32> to vector<16x32xf32>
    %156 = arith.subf %139, %155 : vector<16x32xf32>
    %cst_78 = arith.constant 9.99999996E-13 : f32
    %157 = vector.broadcast %cst_78 : f32 to vector<16x1xf32>
    %158 = arith.addf %154, %157 : vector<16x1xf32>
    %159 = math.rsqrt %158 : vector<16x1xf32>
    %160 = vector.broadcast %159 : vector<16x1xf32> to vector<16x32xf32>
    %161 = arith.mulf %156, %160 : vector<16x32xf32>
    %162 = vector.broadcast %141 : vector<1x32xf32> to vector<16x32xf32>
    %163 = arith.mulf %161, %162 : vector<16x32xf32>
    %164 = vector.broadcast %143 : vector<1x32xf32> to vector<16x32xf32>
    %165 = arith.addf %163, %164 : vector<16x32xf32>
    %166 = arith.truncf %165 : vector<16x32xf32> to vector<16x32xbf16>
    %c0_79 = arith.constant 0 : index
    %c0_80 = arith.constant 0 : index
    %c0_81 = arith.constant 0 : index
    %167 = vector.load %arg10[%c0_79, %c0_80, %c0_81] : memref<2x32x64xbf16, #tpu.memory_space<vmem>>, vector<1x32x64xbf16>
    %168 = vector.shape_cast %167 : vector<1x32x64xbf16> to vector<32x64xbf16>
    %cst_82 = arith.constant dense<0.000000e+00> : vector<16x64xf32>
    %169 = tpu.matmul %166, %168, %cst_82 {dimension_numbers = #tpu.dot_dimension_numbers<[1], [0], [0], [1], [0, 0, 1, 1], [], []>} : vector<16x32xbf16>, vector<32x64xbf16>, vector<16x64xf32> -> vector<16x64xf32>
    %c0_83 = arith.constant 0 : index
    %c0_84 = arith.constant 0 : index
    %c0_85 = arith.constant 0 : index
    %170 = vector.load %arg11[%c0_83, %c0_84, %c0_85] : memref<2x1x64xf32, #tpu.memory_space<vmem>>, vector<1x1x64xf32>
    %171 = vector.shape_cast %170 : vector<1x1x64xf32> to vector<1x64xf32>
    %172 = vector.broadcast %171 : vector<1x64xf32> to vector<16x64xf32>
    %173 = arith.addf %169, %172 : vector<16x64xf32>
    %cst_86 = arith.constant 5.000000e-01 : f32
    %174 = vector.broadcast %cst_86 : f32 to vector<16x64xf32>
    %175 = arith.mulf %174, %173 : vector<16x64xf32>
    %cst_87 = arith.constant 4.471500e-02 : f32
    %176 = vector.broadcast %cst_87 : f32 to vector<16x64xf32>
    %177 = arith.mulf %176, %173 : vector<16x64xf32>
    %178 = arith.mulf %177, %173 : vector<16x64xf32>
    %179 = arith.mulf %178, %173 : vector<16x64xf32>
    %180 = arith.addf %173, %179 : vector<16x64xf32>
    %cst_88 = arith.constant 0.797884583 : f32
    %181 = vector.broadcast %cst_88 : f32 to vector<16x64xf32>
    %182 = arith.mulf %181, %180 : vector<16x64xf32>
    %183 = math.tanh %182 : vector<16x64xf32>
    %cst_89 = arith.constant 1.000000e+00 : f32
    %184 = vector.broadcast %cst_89 : f32 to vector<16x64xf32>
    %185 = arith.addf %184, %183 : vector<16x64xf32>
    %186 = arith.mulf %175, %185 : vector<16x64xf32>
    %187 = arith.truncf %186 : vector<16x64xf32> to vector<16x64xbf16>
    %c0_90 = arith.constant 0 : index
    %c0_91 = arith.constant 0 : index
    %c0_92 = arith.constant 0 : index
    %188 = vector.load %arg12[%c0_90, %c0_91, %c0_92] : memref<2x64x32xbf16, #tpu.memory_space<vmem>>, vector<1x64x32xbf16>
    %189 = vector.shape_cast %188 : vector<1x64x32xbf16> to vector<64x32xbf16>
    %cst_93 = arith.constant dense<0.000000e+00> : vector<16x32xf32>
    %190 = tpu.matmul %187, %189, %cst_93 {dimension_numbers = #tpu.dot_dimension_numbers<[1], [0], [0], [1], [0, 0, 1, 1], [], []>} : vector<16x64xbf16>, vector<64x32xbf16>, vector<16x32xf32> -> vector<16x32xf32>
    %c0_94 = arith.constant 0 : index
    %c0_95 = arith.constant 0 : index
    %c0_96 = arith.constant 0 : index
    %191 = vector.load %arg13[%c0_94, %c0_95, %c0_96] : memref<2x1x32xf32, #tpu.memory_space<vmem>>, vector<1x1x32xf32>
    %192 = vector.shape_cast %191 : vector<1x1x32xf32> to vector<1x32xf32>
    %193 = vector.broadcast %192 : vector<1x32xf32> to vector<16x32xf32>
    %194 = arith.addf %190, %193 : vector<16x32xf32>
    %195 = arith.addf %194, %165 : vector<16x32xf32>
    %c0_97 = arith.constant 0 : index
    %c0_98 = arith.constant 0 : index
    %c0_99 = arith.constant 0 : index
    %196 = vector.load %arg14[%c0_97, %c0_98, %c0_99] : memref<2x1x32xf32, #tpu.memory_space<vmem>>, vector<1x1x32xf32>
    %197 = vector.shape_cast %196 : vector<1x1x32xf32> to vector<1x32xf32>
    %c0_100 = arith.constant 0 : index
    %c0_101 = arith.constant 0 : index
    %c0_102 = arith.constant 0 : index
    %198 = vector.load %arg15[%c0_100, %c0_101, %c0_102] : memref<2x1x32xf32, #tpu.memory_space<vmem>>, vector<1x1x32xf32>
    %199 = vector.shape_cast %198 : vector<1x1x32xf32> to vector<1x32xf32>
    %cst_103 = arith.constant dense<0.000000e+00> : vector<16xf32>
    %200 = vector.multi_reduction <add>, %195, %cst_103 [1] : vector<16x32xf32> to vector<16xf32>
    %201 = vector.shape_cast %200 : vector<16xf32> to vector<16x1xf32>
    %cst_104 = arith.constant 3.200000e+01 : f32
    %202 = vector.broadcast %cst_104 : f32 to vector<16x1xf32>
    %203 = arith.divf %201, %202 : vector<16x1xf32>
    %204 = vector.broadcast %203 : vector<16x1xf32> to vector<16x32xf32>
    %205 = arith.subf %195, %204 : vector<16x32xf32>
    %206 = arith.mulf %205, %205 : vector<16x32xf32>
    %cst_105 = arith.constant dense<0.000000e+00> : vector<16xf32>
    %207 = vector.multi_reduction <add>, %206, %cst_105 [1] : vector<16x32xf32> to vector<16xf32>
    %208 = vector.shape_cast %207 : vector<16xf32> to vector<16x1xf32>
    %cst_106 = arith.constant 3.200000e+01 : f32
    %209 = vector.broadcast %cst_106 : f32 to vector<16x1xf32>
    %210 = arith.divf %208, %209 : vector<16x1xf32>
    %211 = vector.broadcast %203 : vector<16x1xf32> to vector<16x32xf32>
    %212 = arith.subf %195, %211 : vector<16x32xf32>
    %cst_107 = arith.constant 9.99999996E-13 : f32
    %213 = vector.broadcast %cst_107 : f32 to vector<16x1xf32>
    %214 = arith.addf %210, %213 : vector<16x1xf32>
    %215 = math.rsqrt %214 : vector<16x1xf32>
    %216 = vector.broadcast %215 : vector<16x1xf32> to vector<16x32xf32>
    %217 = arith.mulf %212, %216 : vector<16x32xf32>
    %218 = vector.broadcast %197 : vector<1x32xf32> to vector<16x32xf32>
    %219 = arith.mulf %217, %218 : vector<16x32xf32>
    %220 = vector.broadcast %199 : vector<1x32xf32> to vector<16x32xf32>
    %221 = arith.addf %219, %220 : vector<16x32xf32>
    %222 = arith.truncf %221 : vector<16x32xf32> to vector<16x32xbf16>
    %c1 = arith.constant 1 : index
    %c0_108 = arith.constant 0 : index
    %c0_109 = arith.constant 0 : index
    %223 = vector.load %arg5[%c1, %c0_108, %c0_109] : memref<2x32x128xbf16, #tpu.memory_space<vmem>>, vector<1x32x128xbf16>
    %224 = vector.shape_cast %223 : vector<1x32x128xbf16> to vector<32x128xbf16>
    %cst_110 = arith.constant dense<0.000000e+00> : vector<16x128xf32>
    %225 = tpu.matmul %222, %224, %cst_110 {dimension_numbers = #tpu.dot_dimension_numbers<[1], [0], [0], [1], [0, 0, 1, 1], [], []>} : vector<16x32xbf16>, vector<32x128xbf16>, vector<16x128xf32> -> vector<16x128xf32>
    %c1_111 = arith.constant 1 : index
    %c0_112 = arith.constant 0 : index
    %c0_113 = arith.constant 0 : index
    %226 = vector.load %arg6[%c1_111, %c0_112, %c0_113] : memref<2x1x128xf32, #tpu.memory_space<vmem>>, vector<1x1x128xf32>
    %227 = vector.shape_cast %226 : vector<1x1x128xf32> to vector<1x128xf32>
    %228 = vector.broadcast %227 : vector<1x128xf32> to vector<16x128xf32>
    %229 = arith.addf %225, %228 : vector<16x128xf32>
    %c0_114 = arith.constant 0 : index
    %c0_115 = arith.constant 0 : index
    %230 = vector.load %arg21[%c0_114, %c0_115] : memref<16x128xf32, #tpu.memory_space<vmem>>, vector<16x128xf32>
    tpu.vector_store %arg21[%c0_114, %c0_115], %229 {strides = array<i32>} : memref<16x128xf32, #tpu.memory_space<vmem>>, vector<16x128xf32>,
    %231 = vector.extract_strided_slice %26 {offsets = [0, 0], sizes = [1, 8], strides = [1, 1]} : vector<2x8xf32> to vector<1x8xf32>
    %c0_116 = arith.constant 0 : index
    %c0_117 = arith.constant 0 : index
    %232 = vector.load %arg21[%c0_116, %c0_117] : memref<16x128xf32, #tpu.memory_space<vmem>>, vector<8x16xf32>
    %233 = arith.truncf %232 : vector<8x16xf32> to vector<8x16xbf16>
    %c0_118 = arith.constant 0 : index
    %c32_119 = arith.constant 32 : index
    %234 = vector.load %arg21[%c0_118, %c32_119] : memref<16x128xf32, #tpu.memory_space<vmem>>, vector<8x16xf32>
    %235 = arith.truncf %234 : vector<8x16xf32> to vector<8x16xbf16>
    %c0_120 = arith.constant 0 : index
    %c64_121 = arith.constant 64 : index
    %236 = vector.load %arg21[%c0_120, %c64_121] : memref<16x128xf32, #tpu.memory_space<vmem>>, vector<8x32xf32>
    %237 = arith.truncf %236 : vector<8x32xf32> to vector<8x32xbf16>
    %cst_122 = arith.constant dense<0.000000e+00> : vector<8x8xf32>
    %238 = tpu.matmul %233, %235, %cst_122 {dimension_numbers = #tpu.dot_dimension_numbers<[1], [1], [0], [0], [0, 0, 1, 0], [], []>} : vector<8x16xbf16>, vector<8x16xbf16>, vector<8x8xf32> -> vector<8x8xf32>
    %cst_123 = arith.constant 2.500000e-01 : f32
    %239 = vector.broadcast %cst_123 : f32 to vector<8x8xf32>
    %240 = arith.mulf %238, %239 : vector<8x8xf32>
    %241 = vector.broadcast %231 : vector<1x8xf32> to vector<8x8xf32>
    %242 = arith.addf %240, %241 : vector<8x8xf32>
    %cst_124 = arith.constant dense<0xFF800000> : vector<8xf32>
    %243 = vector.multi_reduction <maximumf>, %242, %cst_124 [1] : vector<8x8xf32> to vector<8xf32>
    %244 = vector.shape_cast %243 : vector<8xf32> to vector<8x1xf32>
    %245 = vector.broadcast %244 : vector<8x1xf32> to vector<8x8xf32>
    %246 = arith.subf %242, %245 : vector<8x8xf32>
    %247 = math.exp %246 : vector<8x8xf32>
    %cst_125 = arith.constant dense<0.000000e+00> : vector<8xf32>
    %248 = vector.multi_reduction <add>, %247, %cst_125 [1] : vector<8x8xf32> to vector<8xf32>
    %249 = vector.shape_cast %248 : vector<8xf32> to vector<8x1xf32>
    %250 = tpu.reciprocal %249 {approx = true} : vector<8x1xf32> -> vector<8x1xf32>
    %251 = vector.broadcast %250 : vector<8x1xf32> to vector<8x8xf32>
    %252 = arith.mulf %247, %251 : vector<8x8xf32>
    %253 = arith.truncf %252 : vector<8x8xf32> to vector<8x8xbf16>
    %cst_126 = arith.constant dense<0.000000e+00> : vector<8x32xf32>
    %254 = tpu.matmul %253, %237, %cst_126 {dimension_numbers = #tpu.dot_dimension_numbers<[1], [0], [0], [1], [0, 0, 1, 1], [], []>} : vector<8x8xbf16>, vector<8x32xbf16>, vector<8x32xf32> -> vector<8x32xf32>
    %c0_127 = arith.constant 0 : index
    %c16_128 = arith.constant 16 : index
    %255 = vector.load %arg21[%c0_127, %c16_128] : memref<16x128xf32, #tpu.memory_space<vmem>>, vector<8x16xf32>
    %256 = arith.truncf %255 : vector<8x16xf32> to vector<8x16xbf16>
    %c0_129 = arith.constant 0 : index
    %c48_130 = arith.constant 48 : index
    %257 = vector.load %arg21[%c0_129, %c48_130] : memref<16x128xf32, #tpu.memory_space<vmem>>, vector<8x16xf32>
    %258 = arith.truncf %257 : vector<8x16xf32> to vector<8x16xbf16>
    %c0_131 = arith.constant 0 : index
    %c96_132 = arith.constant 96 : index
    %259 = vector.load %arg21[%c0_131, %c96_132] : memref<16x128xf32, #tpu.memory_space<vmem>>, vector<8x32xf32>
    %260 = arith.truncf %259 : vector<8x32xf32> to vector<8x32xbf16>
    %cst_133 = arith.constant dense<0.000000e+00> : vector<8x8xf32>
    %261 = tpu.matmul %256, %258, %cst_133 {dimension_numbers = #tpu.dot_dimension_numbers<[1], [1], [0], [0], [0, 0, 1, 0], [], []>} : vector<8x16xbf16>, vector<8x16xbf16>, vector<8x8xf32> -> vector<8x8xf32>
    %cst_134 = arith.constant 2.500000e-01 : f32
    %262 = vector.broadcast %cst_134 : f32 to vector<8x8xf32>
    %263 = arith.mulf %261, %262 : vector<8x8xf32>
    %264 = vector.broadcast %231 : vector<1x8xf32> to vector<8x8xf32>
    %265 = arith.addf %263, %264 : vector<8x8xf32>
    %cst_135 = arith.constant dense<0xFF800000> : vector<8xf32>
    %266 = vector.multi_reduction <maximumf>, %265, %cst_135 [1] : vector<8x8xf32> to vector<8xf32>
    %267 = vector.shape_cast %266 : vector<8xf32> to vector<8x1xf32>
    %268 = vector.broadcast %267 : vector<8x1xf32> to vector<8x8xf32>
    %269 = arith.subf %265, %268 : vector<8x8xf32>
    %270 = math.exp %269 : vector<8x8xf32>
    %cst_136 = arith.constant dense<0.000000e+00> : vector<8xf32>
    %271 = vector.multi_reduction <add>, %270, %cst_136 [1] : vector<8x8xf32> to vector<8xf32>
    %272 = vector.shape_cast %271 : vector<8xf32> to vector<8x1xf32>
    %273 = tpu.reciprocal %272 {approx = true} : vector<8x1xf32> -> vector<8x1xf32>
    %274 = vector.broadcast %273 : vector<8x1xf32> to vector<8x8xf32>
    %275 = arith.mulf %270, %274 : vector<8x8xf32>
    %276 = arith.truncf %275 : vector<8x8xf32> to vector<8x8xbf16>
    %cst_137 = arith.constant dense<0.000000e+00> : vector<8x32xf32>
    %277 = tpu.matmul %276, %260, %cst_137 {dimension_numbers = #tpu.dot_dimension_numbers<[1], [0], [0], [1], [0, 0, 1, 1], [], []>} : vector<8x8xbf16>, vector<8x32xbf16>, vector<8x32xf32> -> vector<8x32xf32>
    %278 = arith.addf %254, %277 : vector<8x32xf32>
    %c0_138 = arith.constant 0 : index
    %c0_139 = arith.constant 0 : index
    %279 = vector.load %arg22[%c0_138, %c0_139] : memref<16x32xf32, #tpu.memory_space<vmem>>, vector<8x32xf32>
    tpu.vector_store %arg22[%c0_138, %c0_139], %278 {strides = array<i32>} : memref<16x32xf32, #tpu.memory_space<vmem>>, vector<8x32xf32>,
    %280 = vector.extract_strided_slice %26 {offsets = [1, 0], sizes = [1, 8], strides = [1, 1]} : vector<2x8xf32> to vector<1x8xf32>
    %c8_140 = arith.constant 8 : index
    %c0_141 = arith.constant 0 : index
    %281 = vector.load %arg21[%c8_140, %c0_141] : memref<16x128xf32, #tpu.memory_space<vmem>>, vector<8x16xf32>
    %282 = arith.truncf %281 : vector<8x16xf32> to vector<8x16xbf16>
    %c8_142 = arith.constant 8 : index
    %c32_143 = arith.constant 32 : index
    %283 = vector.load %arg21[%c8_142, %c32_143] : memref<16x128xf32, #tpu.memory_space<vmem>>, vector<8x16xf32>
    %284 = arith.truncf %283 : vector<8x16xf32> to vector<8x16xbf16>
    %c8_144 = arith.constant 8 : index
    %c64_145 = arith.constant 64 : index
    %285 = vector.load %arg21[%c8_144, %c64_145] : memref<16x128xf32, #tpu.memory_space<vmem>>, vector<8x32xf32>
    %286 = arith.truncf %285 : vector<8x32xf32> to vector<8x32xbf16>
    %cst_146 = arith.constant dense<0.000000e+00> : vector<8x8xf32>
    %287 = tpu.matmul %282, %284, %cst_146 {dimension_numbers = #tpu.dot_dimension_numbers<[1], [1], [0], [0], [0, 0, 1, 0], [], []>} : vector<8x16xbf16>, vector<8x16xbf16>, vector<8x8xf32> -> vector<8x8xf32>
    %cst_147 = arith.constant 2.500000e-01 : f32
    %288 = vector.broadcast %cst_147 : f32 to vector<8x8xf32>
    %289 = arith.mulf %287, %288 : vector<8x8xf32>
    %290 = vector.broadcast %280 : vector<1x8xf32> to vector<8x8xf32>
    %291 = arith.addf %289, %290 : vector<8x8xf32>
    %cst_148 = arith.constant dense<0xFF800000> : vector<8xf32>
    %292 = vector.multi_reduction <maximumf>, %291, %cst_148 [1] : vector<8x8xf32> to vector<8xf32>
    %293 = vector.shape_cast %292 : vector<8xf32> to vector<8x1xf32>
    %294 = vector.broadcast %293 : vector<8x1xf32> to vector<8x8xf32>
    %295 = arith.subf %291, %294 : vector<8x8xf32>
    %296 = math.exp %295 : vector<8x8xf32>
    %cst_149 = arith.constant dense<0.000000e+00> : vector<8xf32>
    %297 = vector.multi_reduction <add>, %296, %cst_149 [1] : vector<8x8xf32> to vector<8xf32>
    %298 = vector.shape_cast %297 : vector<8xf32> to vector<8x1xf32>
    %299 = tpu.reciprocal %298 {approx = true} : vector<8x1xf32> -> vector<8x1xf32>
    %300 = vector.broadcast %299 : vector<8x1xf32> to vector<8x8xf32>
    %301 = arith.mulf %296, %300 : vector<8x8xf32>
    %302 = arith.truncf %301 : vector<8x8xf32> to vector<8x8xbf16>
    %cst_150 = arith.constant dense<0.000000e+00> : vector<8x32xf32>
    %303 = tpu.matmul %302, %286, %cst_150 {dimension_numbers = #tpu.dot_dimension_numbers<[1], [0], [0], [1], [0, 0, 1, 1], [], []>} : vector<8x8xbf16>, vector<8x32xbf16>, vector<8x32xf32> -> vector<8x32xf32>
    %c8_151 = arith.constant 8 : index
    %c16_152 = arith.constant 16 : index
    %304 = vector.load %arg21[%c8_151, %c16_152] : memref<16x128xf32, #tpu.memory_space<vmem>>, vector<8x16xf32>
    %305 = arith.truncf %304 : vector<8x16xf32> to vector<8x16xbf16>
    %c8_153 = arith.constant 8 : index
    %c48_154 = arith.constant 48 : index
    %306 = vector.load %arg21[%c8_153, %c48_154] : memref<16x128xf32, #tpu.memory_space<vmem>>, vector<8x16xf32>
    %307 = arith.truncf %306 : vector<8x16xf32> to vector<8x16xbf16>
    %c8_155 = arith.constant 8 : index
    %c96_156 = arith.constant 96 : index
    %308 = vector.load %arg21[%c8_155, %c96_156] : memref<16x128xf32, #tpu.memory_space<vmem>>, vector<8x32xf32>
    %309 = arith.truncf %308 : vector<8x32xf32> to vector<8x32xbf16>
    %cst_157 = arith.constant dense<0.000000e+00> : vector<8x8xf32>
    %310 = tpu.matmul %305, %307, %cst_157 {dimension_numbers = #tpu.dot_dimension_numbers<[1], [1], [0], [0], [0, 0, 1, 0], [], []>} : vector<8x16xbf16>, vector<8x16xbf16>, vector<8x8xf32> -> vector<8x8xf32>
    %cst_158 = arith.constant 2.500000e-01 : f32
    %311 = vector.broadcast %cst_158 : f32 to vector<8x8xf32>
    %312 = arith.mulf %310, %311 : vector<8x8xf32>
    %313 = vector.broadcast %280 : vector<1x8xf32> to vector<8x8xf32>
    %314 = arith.addf %312, %313 : vector<8x8xf32>
    %cst_159 = arith.constant dense<0xFF800000> : vector<8xf32>
    %315 = vector.multi_reduction <maximumf>, %314, %cst_159 [1] : vector<8x8xf32> to vector<8xf32>
    %316 = vector.shape_cast %315 : vector<8xf32> to vector<8x1xf32>
    %317 = vector.broadcast %316 : vector<8x1xf32> to vector<8x8xf32>
    %318 = arith.subf %314, %317 : vector<8x8xf32>
    %319 = math.exp %318 : vector<8x8xf32>
    %cst_160 = arith.constant dense<0.000000e+00> : vector<8xf32>
    %320 = vector.multi_reduction <add>, %319, %cst_160 [1] : vector<8x8xf32> to vector<8xf32>
    %321 = vector.shape_cast %320 : vector<8xf32> to vector<8x1xf32>
    %322 = tpu.reciprocal %321 {approx = true} : vector<8x1xf32> -> vector<8x1xf32>
    %323 = vector.broadcast %322 : vector<8x1xf32> to vector<8x8xf32>
    %324 = arith.mulf %319, %323 : vector<8x8xf32>
    %325 = arith.truncf %324 : vector<8x8xf32> to vector<8x8xbf16>
    %cst_161 = arith.constant dense<0.000000e+00> : vector<8x32xf32>
    %326 = tpu.matmul %325, %309, %cst_161 {dimension_numbers = #tpu.dot_dimension_numbers<[1], [0], [0], [1], [0, 0, 1, 1], [], []>} : vector<8x8xbf16>, vector<8x32xbf16>, vector<8x32xf32> -> vector<8x32xf32>
    %327 = arith.addf %303, %326 : vector<8x32xf32>
    %c8_162 = arith.constant 8 : index
    %c0_163 = arith.constant 0 : index
    %328 = vector.load %arg22[%c8_162, %c0_163] : memref<16x32xf32, #tpu.memory_space<vmem>>, vector<8x32xf32>
    tpu.vector_store %arg22[%c8_162, %c0_163], %327 {strides = array<i32>} : memref<16x32xf32, #tpu.memory_space<vmem>>, vector<8x32xf32>,
    %c0_164 = arith.constant 0 : index
    %c0_165 = arith.constant 0 : index
    %329 = vector.load %arg22[%c0_164, %c0_165] : memref<16x32xf32, #tpu.memory_space<vmem>>, vector<16x32xf32>
    %c1_166 = arith.constant 1 : index
    %c0_167 = arith.constant 0 : index
    %c0_168 = arith.constant 0 : index
    %330 = vector.load %arg7[%c1_166, %c0_167, %c0_168] : memref<2x1x32xf32, #tpu.memory_space<vmem>>, vector<1x1x32xf32>
    %331 = vector.shape_cast %330 : vector<1x1x32xf32> to vector<1x32xf32>
    %332 = vector.broadcast %331 : vector<1x32xf32> to vector<16x32xf32>
    %333 = arith.addf %329, %332 : vector<16x32xf32>
    %334 = arith.addf %333, %221 : vector<16x32xf32>
    %c1_169 = arith.constant 1 : index
    %c0_170 = arith.constant 0 : index
    %c0_171 = arith.constant 0 : index
    %335 = vector.load %arg8[%c1_169, %c0_170, %c0_171] : memref<2x1x32xf32, #tpu.memory_space<vmem>>, vector<1x1x32xf32>
    %336 = vector.shape_cast %335 : vector<1x1x32xf32> to vector<1x32xf32>
    %c1_172 = arith.constant 1 : index
    %c0_173 = arith.constant 0 : index
    %c0_174 = arith.constant 0 : index
    %337 = vector.load %arg9[%c1_172, %c0_173, %c0_174] : memref<2x1x32xf32, #tpu.memory_space<vmem>>, vector<1x1x32xf32>
    %338 = vector.shape_cast %337 : vector<1x1x32xf32> to vector<1x32xf32>
    %cst_175 = arith.constant dense<0.000000e+00> : vector<16xf32>
    %339 = vector.multi_reduction <add>, %334, %cst_175 [1] : vector<16x32xf32> to vector<16xf32>
    %340 = vector.shape_cast %339 : vector<16xf32> to vector<16x1xf32>
    %cst_176 = arith.constant 3.200000e+01 : f32
    %341 = vector.broadcast %cst_176 : f32 to vector<16x1xf32>
    %342 = arith.divf %340, %341 : vector<16x1xf32>
    %343 = vector.broadcast %342 : vector<16x1xf32> to vector<16x32xf32>
    %344 = arith.subf %334, %343 : vector<16x32xf32>
    %345 = arith.mulf %344, %344 : vector<16x32xf32>
    %cst_177 = arith.constant dense<0.000000e+00> : vector<16xf32>
    %346 = vector.multi_reduction <add>, %345, %cst_177 [1] : vector<16x32xf32> to vector<16xf32>
    %347 = vector.shape_cast %346 : vector<16xf32> to vector<16x1xf32>
    %cst_178 = arith.constant 3.200000e+01 : f32
    %348 = vector.broadcast %cst_178 : f32 to vector<16x1xf32>
    %349 = arith.divf %347, %348 : vector<16x1xf32>
    %350 = vector.broadcast %342 : vector<16x1xf32> to vector<16x32xf32>
    %351 = arith.subf %334, %350 : vector<16x32xf32>
    %cst_179 = arith.constant 9.99999996E-13 : f32
    %352 = vector.broadcast %cst_179 : f32 to vector<16x1xf32>
    %353 = arith.addf %349, %352 : vector<16x1xf32>
    %354 = math.rsqrt %353 : vector<16x1xf32>
    %355 = vector.broadcast %354 : vector<16x1xf32> to vector<16x32xf32>
    %356 = arith.mulf %351, %355 : vector<16x32xf32>
    %357 = vector.broadcast %336 : vector<1x32xf32> to vector<16x32xf32>
    %358 = arith.mulf %356, %357 : vector<16x32xf32>
    %359 = vector.broadcast %338 : vector<1x32xf32> to vector<16x32xf32>
    %360 = arith.addf %358, %359 : vector<16x32xf32>
    %361 = arith.truncf %360 : vector<16x32xf32> to vector<16x32xbf16>
    %c1_180 = arith.constant 1 : index
    %c0_181 = arith.constant 0 : index
    %c0_182 = arith.constant 0 : index
    %362 = vector.load %arg10[%c1_180, %c0_181, %c0_182] : memref<2x32x64xbf16, #tpu.memory_space<vmem>>, vector<1x32x64xbf16>
    %363 = vector.shape_cast %362 : vector<1x32x64xbf16> to vector<32x64xbf16>
    %cst_183 = arith.constant dense<0.000000e+00> : vector<16x64xf32>
    %364 = tpu.matmul %361, %363, %cst_183 {dimension_numbers = #tpu.dot_dimension_numbers<[1], [0], [0], [1], [0, 0, 1, 1], [], []>} : vector<16x32xbf16>, vector<32x64xbf16>, vector<16x64xf32> -> vector<16x64xf32>
    %c1_184 = arith.constant 1 : index
    %c0_185 = arith.constant 0 : index
    %c0_186 = arith.constant 0 : index
    %365 = vector.load %arg11[%c1_184, %c0_185, %c0_186] : memref<2x1x64xf32, #tpu.memory_space<vmem>>, vector<1x1x64xf32>
    %366 = vector.shape_cast %365 : vector<1x1x64xf32> to vector<1x64xf32>
    %367 = vector.broadcast %366 : vector<1x64xf32> to vector<16x64xf32>
    %368 = arith.addf %364, %367 : vector<16x64xf32>
    %cst_187 = arith.constant 5.000000e-01 : f32
    %369 = vector.broadcast %cst_187 : f32 to vector<16x64xf32>
    %370 = arith.mulf %369, %368 : vector<16x64xf32>
    %cst_188 = arith.constant 4.471500e-02 : f32
    %371 = vector.broadcast %cst_188 : f32 to vector<16x64xf32>
    %372 = arith.mulf %371, %368 : vector<16x64xf32>
    %373 = arith.mulf %372, %368 : vector<16x64xf32>
    %374 = arith.mulf %373, %368 : vector<16x64xf32>
    %375 = arith.addf %368, %374 : vector<16x64xf32>
    %cst_189 = arith.constant 0.797884583 : f32
    %376 = vector.broadcast %cst_189 : f32 to vector<16x64xf32>
    %377 = arith.mulf %376, %375 : vector<16x64xf32>
    %378 = math.tanh %377 : vector<16x64xf32>
    %cst_190 = arith.constant 1.000000e+00 : f32
    %379 = vector.broadcast %cst_190 : f32 to vector<16x64xf32>
    %380 = arith.addf %379, %378 : vector<16x64xf32>
    %381 = arith.mulf %370, %380 : vector<16x64xf32>
    %382 = arith.truncf %381 : vector<16x64xf32> to vector<16x64xbf16>
    %c1_191 = arith.constant 1 : index
    %c0_192 = arith.constant 0 : index
    %c0_193 = arith.constant 0 : index
    %383 = vector.load %arg12[%c1_191, %c0_192, %c0_193] : memref<2x64x32xbf16, #tpu.memory_space<vmem>>, vector<1x64x32xbf16>
    %384 = vector.shape_cast %383 : vector<1x64x32xbf16> to vector<64x32xbf16>
    %cst_194 = arith.constant dense<0.000000e+00> : vector<16x32xf32>
    %385 = tpu.matmul %382, %384, %cst_194 {dimension_numbers = #tpu.dot_dimension_numbers<[1], [0], [0], [1], [0, 0, 1, 1], [], []>} : vector<16x64xbf16>, vector<64x32xbf16>, vector<16x32xf32> -> vector<16x32xf32>
    %c1_195 = arith.constant 1 : index
    %c0_196 = arith.constant 0 : index
    %c0_197 = arith.constant 0 : index
    %386 = vector.load %arg13[%c1_195, %c0_196, %c0_197] : memref<2x1x32xf32, #tpu.memory_space<vmem>>, vector<1x1x32xf32>
    %387 = vector.shape_cast %386 : vector<1x1x32xf32> to vector<1x32xf32>
    %388 = vector.broadcast %387 : vector<1x32xf32> to vector<16x32xf32>
    %389 = arith.addf %385, %388 : vector<16x32xf32>
    %390 = arith.addf %389, %360 : vector<16x32xf32>
    %c1_198 = arith.constant 1 : index
    %c0_199 = arith.constant 0 : index
    %c0_200 = arith.constant 0 : index
    %391 = vector.load %arg14[%c1_198, %c0_199, %c0_200] : memref<2x1x32xf32, #tpu.memory_space<vmem>>, vector<1x1x32xf32>
    %392 = vector.shape_cast %391 : vector<1x1x32xf32> to vector<1x32xf32>
    %c1_201 = arith.constant 1 : index
    %c0_202 = arith.constant 0 : index
    %c0_203 = arith.constant 0 : index
    %393 = vector.load %arg15[%c1_201, %c0_202, %c0_203] : memref<2x1x32xf32, #tpu.memory_space<vmem>>, vector<1x1x32xf32>
    %394 = vector.shape_cast %393 : vector<1x1x32xf32> to vector<1x32xf32>
    %cst_204 = arith.constant dense<0.000000e+00> : vector<16xf32>
    %395 = vector.multi_reduction <add>, %390, %cst_204 [1] : vector<16x32xf32> to vector<16xf32>
    %396 = vector.shape_cast %395 : vector<16xf32> to vector<16x1xf32>
    %cst_205 = arith.constant 3.200000e+01 : f32
    %397 = vector.broadcast %cst_205 : f32 to vector<16x1xf32>
    %398 = arith.divf %396, %397 : vector<16x1xf32>
    %399 = vector.broadcast %398 : vector<16x1xf32> to vector<16x32xf32>
    %400 = arith.subf %390, %399 : vector<16x32xf32>
    %401 = arith.mulf %400, %400 : vector<16x32xf32>
    %cst_206 = arith.constant dense<0.000000e+00> : vector<16xf32>
    %402 = vector.multi_reduction <add>, %401, %cst_206 [1] : vector<16x32xf32> to vector<16xf32>
    %403 = vector.shape_cast %402 : vector<16xf32> to vector<16x1xf32>
    %cst_207 = arith.constant 3.200000e+01 : f32
    %404 = vector.broadcast %cst_207 : f32 to vector<16x1xf32>
    %405 = arith.divf %403, %404 : vector<16x1xf32>
    %406 = vector.broadcast %398 : vector<16x1xf32> to vector<16x32xf32>
    %407 = arith.subf %390, %406 : vector<16x32xf32>
    %cst_208 = arith.constant 9.99999996E-13 : f32
    %408 = vector.broadcast %cst_208 : f32 to vector<16x1xf32>
    %409 = arith.addf %405, %408 : vector<16x1xf32>
    %410 = math.rsqrt %409 : vector<16x1xf32>
    %411 = vector.broadcast %410 : vector<16x1xf32> to vector<16x32xf32>
    %412 = arith.mulf %407, %411 : vector<16x32xf32>
    %413 = vector.broadcast %392 : vector<1x32xf32> to vector<16x32xf32>
    %414 = arith.mulf %412, %413 : vector<16x32xf32>
    %415 = vector.broadcast %394 : vector<1x32xf32> to vector<16x32xf32>
    %416 = arith.addf %414, %415 : vector<16x32xf32>
    %417 = vector.extract_strided_slice %416 {offsets = [0, 0], sizes = [1, 32], strides = [1, 1]} : vector<16x32xf32> to vector<1x32xf32>
    %418 = vector.extract_strided_slice %416 {offsets = [8, 0], sizes = [1, 32], strides = [1, 1]} : vector<16x32xf32> to vector<1x32xf32>
    %419 = tpu.concatenate %417, %418 in 0 : vector<1x32xf32>, vector<1x32xf32> -> vector<2x32xf32>
    %420 = arith.truncf %419 : vector<2x32xf32> to vector<2x32xbf16>
    %c0_209 = arith.constant 0 : index
    %c0_210 = arith.constant 0 : index
    %421 = vector.load %arg16[%c0_209, %c0_210] : memref<32x32xbf16, #tpu.memory_space<vmem>>, vector<32x32xbf16>
    %cst_211 = arith.constant dense<0.000000e+00> : vector<2x32xf32>
    %422 = tpu.matmul %420, %421, %cst_211 {dimension_numbers = #tpu.dot_dimension_numbers<[1], [0], [0], [1], [0, 0, 1, 1], [], []>} : vector<2x32xbf16>, vector<32x32xbf16>, vector<2x32xf32> -> vector<2x32xf32>
    %c0_212 = arith.constant 0 : index
    %c0_213 = arith.constant 0 : index
    %423 = vector.load %arg17[%c0_212, %c0_213] : memref<1x32xf32, #tpu.memory_space<vmem>>, vector<1x32xf32>
    %424 = vector.broadcast %423 : vector<1x32xf32> to vector<2x32xf32>
    %425 = arith.addf %422, %424 : vector<2x32xf32>
    %426 = math.tanh %425 : vector<2x32xf32>
    %427 = arith.truncf %426 : vector<2x32xf32> to vector<2x32xbf16>
    %c0_214 = arith.constant 0 : index
    %c0_215 = arith.constant 0 : index
    %428 = vector.load %arg18[%c0_214, %c0_215] : memref<32x128xbf16, #tpu.memory_space<vmem>>, vector<32x128xbf16>
    %cst_216 = arith.constant dense<0.000000e+00> : vector<2x128xf32>
    %429 = tpu.matmul %427, %428, %cst_216 {dimension_numbers = #tpu.dot_dimension_numbers<[1], [0], [0], [1], [0, 0, 1, 1], [], []>} : vector<2x32xbf16>, vector<32x128xbf16>, vector<2x128xf32> -> vector<2x128xf32>
    %c0_217 = arith.constant 0 : index
    %c0_218 = arith.constant 0 : index
    %430 = vector.load %arg19[%c0_217, %c0_218] : memref<1x128xf32, #tpu.memory_space<vmem>>, vector<1x128xf32>
    %431 = vector.broadcast %430 : vector<1x128xf32> to vector<2x128xf32>
    %432 = arith.addf %429, %431 : vector<2x128xf32>
    %c0_219 = arith.constant 0 : index
    %c0_220 = arith.constant 0 : index
    %c0_221 = arith.constant 0 : index
    %433 = vector.load %arg20[%c0_219, %c0_220, %c0_221] : memref<1x2x128xf32, #tpu.memory_space<vmem>>, vector<1x2x128xf32>
    %434 = vector.shape_cast %433 : vector<1x2x128xf32> to vector<2x128xf32>
    %435 = vector.shape_cast %432 : vector<2x128xf32> to vector<1x2x128xf32>
    tpu.vector_store %arg20[%c0_219, %c0_220, %c0_221], %435 {strides = array<i32>} : memref<1x2x128xf32, #tpu.memory_space<vmem>>, vector<1x2x128xf32>,
    return
  }
  func.func @transform_0(%arg0: i32) -> (i32, i32) {
    %c0_i32 = arith.constant 0 : i32
    %c0_i32_0 = arith.constant 0 : i32
    return %arg0, %c0_i32 : i32, i32
  }
  func.func @transform_1(%arg0: i32) -> (i32, i32, i32) {
    %c0_i32 = arith.constant 0 : i32
    %c0_i32_0 = arith.constant 0 : i32
    %c0_i32_1 = arith.constant 0 : i32
    return %arg0, %c0_i32, %c0_i32_0 : i32, i32, i32
  }
  func.func @transform_2(%arg0: i32) -> (i32, i32) {
    %c0_i32 = arith.constant 0 : i32
    %c0_i32_0 = arith.constant 0 : i32
    %c0_i32_1 = arith.constant 0 : i32
    return %c0_i32, %c0_i32_0 : i32, i32
  }
  func.func @transform_3(%arg0: i32) -> (i32, i32) {
    %c0_i32 = arith.constant 0 : i32
    %c0_i32_0 = arith.constant 0 : i32
    %c0_i32_1 = arith.constant 0 : i32
    return %c0_i32, %c0_i32_0 : i32, i32
  }
  func.func @transform_4(%arg0: i32) -> (i32, i32, i32) {
    %c0_i32 = arith.constant 0 : i32
    %c0_i32_0 = arith.constant 0 : i32
    %c0_i32_1 = arith.constant 0 : i32
    %c0_i32_2 = arith.constant 0 : i32
    return %c0_i32, %c0_i32_0, %c0_i32_1 : i32, i32, i32
  }
  func.func @transform_5(%arg0: i32) -> (i32, i32, i32) {
    %c0_i32 = arith.constant 0 : i32
    %c0_i32_0 = arith.constant 0 : i32
    %c0_i32_1 = arith.constant 0 : i32
    %c0_i32_2 = arith.constant 0 : i32
    return %c0_i32, %c0_i32_0, %c0_i32_1 : i32, i32, i32
  }
  func.func @transform_6(%arg0: i32) -> (i32, i32, i32) {
    %c0_i32 = arith.constant 0 : i32
    %c0_i32_0 = arith.constant 0 : i32
    %c0_i32_1 = arith.constant 0 : i32
    %c0_i32_2 = arith.constant 0 : i32
    return %c0_i32, %c0_i32_0, %c0_i32_1 : i32, i32, i32
  }
  func.func @transform_7(%arg0: i32) -> (i32, i32, i32) {
    %c0_i32 = arith.constant 0 : i32
    %c0_i32_0 = arith.constant 0 : i32
    %c0_i32_1 = arith.constant 0 : i32
    %c0_i32_2 = arith.constant 0 : i32
    return %c0_i32, %c0_i32_0, %c0_i32_1 : i32, i32, i32
  }
  func.func @transform_8(%arg0: i32) -> (i32, i32, i32) {
    %c0_i32 = arith.constant 0 : i32
    %c0_i32_0 = arith.constant 0 : i32
    %c0_i32_1 = arith.constant 0 : i32
    %c0_i32_2 = arith.constant 0 : i32
    return %c0_i32, %c0_i32_0, %c0_i32_1 : i32, i32, i32
  }
  func.func @transform_9(%arg0: i32) -> (i32, i32, i32) {
    %c0_i32 = arith.constant 0 : i32
    %c0_i32_0 = arith.constant 0 : i32
    %c0_i32_1 = arith.constant 0 : i32
    %c0_i32_2 = arith.constant 0 : i32
    return %c0_i32, %c0_i32_0, %c0_i32_1 : i32, i32, i32
  }
  func.func @transform_10(%arg0: i32) -> (i32, i32, i32) {
    %c0_i32 = arith.constant 0 : i32
    %c0_i32_0 = arith.constant 0 : i32
    %c0_i32_1 = arith.constant 0 : i32
    %c0_i32_2 = arith.constant 0 : i32
    return %c0_i32, %c0_i32_0, %c0_i32_1 : i32, i32, i32
  }
  func.func @transform_11(%arg0: i32) -> (i32, i32, i32) {
    %c0_i32 = arith.constant 0 : i32
    %c0_i32_0 = arith.constant 0 : i32
    %c0_i32_1 = arith.constant 0 : i32
    %c0_i32_2 = arith.constant 0 : i32
    return %c0_i32, %c0_i32_0, %c0_i32_1 : i32, i32, i32
  }
  func.func @transform_12(%arg0: i32) -> (i32, i32, i32) {
    %c0_i32 = arith.constant 0 : i32
    %c0_i32_0 = arith.constant 0 : i32
    %c0_i32_1 = arith.constant 0 : i32
    %c0_i32_2 = arith.constant 0 : i32
    return %c0_i32, %c0_i32_0, %c0_i32_1 : i32, i32, i32
  }
  func.func @transform_13(%arg0: i32) -> (i32, i32, i32) {
    %c0_i32 = arith.constant 0 : i32
    %c0_i32_0 = arith.constant 0 : i32
    %c0_i32_1 = arith.constant 0 : i32
    %c0_i32_2 = arith.constant 0 : i32
    return %c0_i32, %c0_i32_0, %c0_i32_1 : i32, i32, i32
  }
  func.func @transform_14(%arg0: i32) -> (i32, i32, i32) {
    %c0_i32 = arith.constant 0 : i32
    %c0_i32_0 = arith.constant 0 : i32
    %c0_i32_1 = arith.constant 0 : i32
    %c0_i32_2 = arith.constant 0 : i32
    return %c0_i32, %c0_i32_0, %c0_i32_1 : i32, i32, i32
  }
  func.func @transform_15(%arg0: i32) -> (i32, i32) {
    %c0_i32 = arith.constant 0 : i32
    %c0_i32_0 = arith.constant 0 : i32
    %c0_i32_1 = arith.constant 0 : i32
    return %c0_i32, %c0_i32_0 : i32, i32
  }
  func.func @transform_16(%arg0: i32) -> (i32, i32) {
    %c0_i32 = arith.constant 0 : i32
    %c0_i32_0 = arith.constant 0 : i32
    %c0_i32_1 = arith.constant 0 : i32
    return %c0_i32, %c0_i32_0 : i32, i32
  }
  func.func @transform_17(%arg0: i32) -> (i32, i32) {
    %c0_i32 = arith.constant 0 : i32
    %c0_i32_0 = arith.constant 0 : i32
    %c0_i32_1 = arith.constant 0 : i32
    return %c0_i32, %c0_i32_0 : i32, i32
  }
  func.func @transform_18(%arg0: i32) -> (i32, i32) {
    %c0_i32 = arith.constant 0 : i32
    %c0_i32_0 = arith.constant 0 : i32
    %c0_i32_1 = arith.constant 0 : i32
    return %c0_i32, %c0_i32_0 : i32, i32
  }
  func.func @transform_19(%arg0: i32) -> (i32, i32, i32) {
    %c0_i32 = arith.constant 0 : i32
    %c0_i32_0 = arith.constant 0 : i32
    %c0_i32_1 = arith.constant 0 : i32
    return %arg0, %c0_i32, %c0_i32_0 : i32, i32, i32
  }
}

</mosaic_0001>

<llo_original>
// kernel: sentiment_classifier_forward.1
$region0: #{sentiment_classifier_forward.1}
  #allocation0 [shape = 'u32[]', space=smem, size = 0x4, offset = 0x4, fixed_abs, tag = 'smem constant byte address 0x4 - core index']
  #allocation1 [shape = 'u32[144,128]{1,0:T(1,128)}', space=vmem, size = 0x12000, scoped, tag = 'internal scratch']
  #allocation2 [shape = 'f32[16,128]{1,0:T(8,128)}', space=vmem, size = 0x2000, scoped, tag = 'scratch operand']
  #allocation3 [shape = 'f32[16,32]{1,0:T(8,128)}', space=vmem, size = 0x2000, scoped, tag = 'scratch operand']
  %s0 = inlined_call_operand.vmem [shape: f32[16,32], index: 0, kind: input, shape index: {}]
  %s1 = inlined_call_operand.vmem [shape: f32[1,2,8], index: 1, kind: input, shape index: {}]
  %s2 = inlined_call_operand.vmem [shape: f32[1,32], index: 2, kind: input, shape index: {}]
  %s3 = inlined_call_operand.vmem [shape: f32[1,32], index: 3, kind: input, shape index: {}]
  %s4 = inlined_call_operand.vmem [shape: bf16[2,32,128], index: 4, kind: input, shape index: {}]
  %s5 = inlined_call_operand.vmem [shape: f32[2,1,128], index: 5, kind: input, shape index: {}]
  %s6 = inlined_call_operand.vmem [shape: f32[2,1,32], index: 6, kind: input, shape index: {}]
  %s7 = inlined_call_operand.vmem [shape: f32[2,1,32], index: 7, kind: input, shape index: {}]
  %s8 = inlined_call_operand.vmem [shape: f32[2,1,32], index: 8, kind: input, shape index: {}]
  %s9 = inlined_call_operand.vmem [shape: bf16[2,32,64], index: 9, kind: input, shape index: {}]
  %s10 = inlined_call_operand.vmem [shape: f32[2,1,64], index: 10, kind: input, shape index: {}]
  %s11 = inlined_call_operand.vmem [shape: bf16[2,64,32], index: 11, kind: input, shape index: {}]
  %s12 = inlined_call_operand.vmem [shape: f32[2,1,32], index: 12, kind: input, shape index: {}]
  %s13 = inlined_call_operand.vmem [shape: f32[2,1,32], index: 13, kind: input, shape index: {}]
  %s14 = inlined_call_operand.vmem [shape: f32[2,1,32], index: 14, kind: input, shape index: {}]
  %s15 = inlined_call_operand.vmem [shape: bf16[32,32], index: 15, kind: input, shape index: {}]
  %s16 = inlined_call_operand.vmem [shape: f32[1,32], index: 16, kind: input, shape index: {}]
  %s17 = inlined_call_operand.vmem [shape: bf16[32,128], index: 17, kind: input, shape index: {}]
  %s18 = inlined_call_operand.vmem [shape: f32[1,128], index: 18, kind: input, shape index: {}]
  %s19 = inlined_call_operand.hbm [shape: f32[1,2,128], index: 19, kind: output, shape index: {}]
  %s20 = sld [smem:[#allocation0]]
  $region86: #{sentiment_classifier_forward.1} parent=0
    _
  %s22 = ssub.s32 1, %s20
  %s23 = scalar_select 0, %s22, %s20
  $region1: #{sentiment_classifier_forward.1} parent=0
    #allocation4 [shape = 'u8[1024]{0}', space=vmem, size = 0x400, scoped, tag = 'output window, operand 0, single buffered']
    #allocation5 [shape = 's32[1]{0}', space=sflag, size = 0x4, scoped, tag = 'scoped memory for sentiment_classifier_forward.1']
    %24 = vsyncpa [#allocation5], 0
    // Predicated region
    $region2: #{sentiment_classifier_forward.1} parent=1 // pred_check
      _
    $region3: #{sentiment_classifier_forward.1} parent=1 // pred_check_branch
      %26 = sbr.rel (0) target = $region5
    $region4: #{sentiment_classifier_forward.1} parent=1 // pred_region
      _
    $region5: #{sentiment_classifier_forward.1} parent=1 // pred_fallthru
      _
    // Predicated region
    $region6: #{sentiment_classifier_forward.1} parent=1 // pred_check
      _
    $region7: #{sentiment_classifier_forward.1} parent=1 // pred_check_branch
      %28 = sbr.rel (0) target = $region9
    $region8: #{sentiment_classifier_forward.1} parent=1 // pred_region
      _
    $region9: #{sentiment_classifier_forward.1} parent=1 // pred_fallthru
      _
    // Predicated region
    $region10: #{sentiment_classifier_forward.1} parent=1 // pred_check
      _
    $region11: #{sentiment_classifier_forward.1} parent=1 // pred_check_branch
      %30 = sbr.rel (0) target = $region13
    $region12: #{sentiment_classifier_forward.1} parent=1 // pred_region
      _
    $region13: #{sentiment_classifier_forward.1} parent=1 // pred_fallthru
      _
    // Predicated region
    $region14: #{sentiment_classifier_forward.1} parent=1 // pred_check
      _
    $region15: #{sentiment_classifier_forward.1} parent=1 // pred_check_branch
      %32 = sbr.rel (0) target = $region17
    $region16: #{sentiment_classifier_forward.1} parent=1 // pred_region
      _
    $region17: #{sentiment_classifier_forward.1} parent=1 // pred_fallthru
      _
    // Predicated region
    $region18: #{sentiment_classifier_forward.1} parent=1 // pred_check
      _
    $region19: #{sentiment_classifier_forward.1} parent=1 // pred_check_branch
      %34 = sbr.rel (0) target = $region21
    $region20: #{sentiment_classifier_forward.1} parent=1 // pred_region
      _
    $region21: #{sentiment_classifier_forward.1} parent=1 // pred_fallthru
      _
    // Predicated region
    $region22: #{sentiment_classifier_forward.1} parent=1 // pred_check
      _
    $region23: #{sentiment_classifier_forward.1} parent=1 // pred_check_branch
      %36 = sbr.rel (0) target = $region25
    $region24: #{sentiment_classifier_forward.1} parent=1 // pred_region
      _
    $region25: #{sentiment_classifier_forward.1} parent=1 // pred_fallthru
      _
    // Predicated region
    $region26: #{sentiment_classifier_forward.1} parent=1 // pred_check
      _
    $region27: #{sentiment_classifier_forward.1} parent=1 // pred_check_branch
      %38 = sbr.rel (0) target = $region29
    $region28: #{sentiment_classifier_forward.1} parent=1 // pred_region
      _
    $region29: #{sentiment_classifier_forward.1} parent=1 // pred_fallthru
      _
    // Predicated region
    $region30: #{sentiment_classifier_forward.1} parent=1 // pred_check
      _
    $region31: #{sentiment_classifier_forward.1} parent=1 // pred_check_branch
      %40 = sbr.rel (0) target = $region33
    $region32: #{sentiment_classifier_forward.1} parent=1 // pred_region
      _
    $region33: #{sentiment_classifier_forward.1} parent=1 // pred_fallthru
      _
    // Predicated region
    $region34: #{sentiment_classifier_forward.1} parent=1 // pred_check
      _
    $region35: #{sentiment_classifier_forward.1} parent=1 // pred_check_branch
      %42 = sbr.rel (0) target = $region37
    $region36: #{sentiment_classifier_forward.1} parent=1 // pred_region
      _
    $region37: #{sentiment_classifier_forward.1} parent=1 // pred_fallthru
      _
    // Predicated region
    $region38: #{sentiment_classifier_forward.1} parent=1 // pred_check
      _
    $region39: #{sentiment_classifier_forward.1} parent=1 // pred_check_branch
      %44 = sbr.rel (0) target = $region41
    $region40: #{sentiment_classifier_forward.1} parent=1 // pred_region
      _
    $region41: #{sentiment_classifier_forward.1} parent=1 // pred_fallthru
      _
    // Predicated region
    $region42: #{sentiment_classifier_forward.1} parent=1 // pred_check
      _
    $region43: #{sentiment_classifier_forward.1} parent=1 // pred_check_branch
      %46 = sbr.rel (0) target = $region45
    $region44: #{sentiment_classifier_forward.1} parent=1 // pred_region
      _
    $region45: #{sentiment_classifier_forward.1} parent=1 // pred_fallthru
      _
    // Predicated region
    $region46: #{sentiment_classifier_forward.1} parent=1 // pred_check
      _
    $region47: #{sentiment_classifier_forward.1} parent=1 // pred_check_branch
      %48 = sbr.rel (0) target = $region49
    $region48: #{sentiment_classifier_forward.1} parent=1 // pred_region
      _
    $region49: #{sentiment_classifier_forward.1} parent=1 // pred_fallthru
      _
    // Predicated region
    $region50: #{sentiment_classifier_forward.1} parent=1 // pred_check
      _
    $region51: #{sentiment_classifier_forward.1} parent=1 // pred_check_branch
      %50 = sbr.rel (0) target = $region53
    $region52: #{sentiment_classifier_forward.1} parent=1 // pred_region
      _
    $region53: #{sentiment_classifier_forward.1} parent=1 // pred_fallthru
      _
    // Predicated region
    $region54: #{sentiment_classifier_forward.1} parent=1 // pred_check
      _
    $region55: #{sentiment_classifier_forward.1} parent=1 // pred_check_branch
      %52 = sbr.rel (0) target = $region57
    $region56: #{sentiment_classifier_forward.1} parent=1 // pred_region
      _
    $region57: #{sentiment_classifier_forward.1} parent=1 // pred_fallthru
      _
    // Predicated region
    $region58: #{sentiment_classifier_forward.1} parent=1 // pred_check
      _
    $region59: #{sentiment_classifier_forward.1} parent=1 // pred_check_branch
      %54 = sbr.rel (0) target = $region61
    $region60: #{sentiment_classifier_forward.1} parent=1 // pred_region
      _
    $region61: #{sentiment_classifier_forward.1} parent=1 // pred_fallthru
      _
    // Predicated region
    $region62: #{sentiment_classifier_forward.1} parent=1 // pred_check
      _
    $region63: #{sentiment_classifier_forward.1} parent=1 // pred_check_branch
      %56 = sbr.rel (0) target = $region65
    $region64: #{sentiment_classifier_forward.1} parent=1 // pred_region
      _
    $region65: #{sentiment_classifier_forward.1} parent=1 // pred_fallthru
      _
    // Predicated region
    $region66: #{sentiment_classifier_forward.1} parent=1 // pred_check
      _
    $region67: #{sentiment_classifier_forward.1} parent=1 // pred_check_branch
      %58 = sbr.rel (0) target = $region69
    $region68: #{sentiment_classifier_forward.1} parent=1 // pred_region
      _
    $region69: #{sentiment_classifier_forward.1} parent=1 // pred_fallthru
      _
    // Predicated region
    $region70: #{sentiment_classifier_forward.1} parent=1 // pred_check
      _
    $region71: #{sentiment_classifier_forward.1} parent=1 // pred_check_branch
      %60 = sbr.rel (0) target = $region73
    $region72: #{sentiment_classifier_forward.1} parent=1 // pred_region
      _
    $region73: #{sentiment_classifier_forward.1} parent=1 // pred_fallthru
      _
    // Predicated region
    $region74: #{sentiment_classifier_forward.1} parent=1 // pred_check
      _
    $region75: #{sentiment_classifier_forward.1} parent=1 // pred_check_branch
      %62 = sbr.rel (0) target = $region77
    $region76: #{sentiment_classifier_forward.1} parent=1 // pred_region
      _
    $region77: #{sentiment_classifier_forward.1} parent=1 // pred_fallthru
      _
    %v64 = vld [vmem:[%s0] sm:$0xff]
    %v65 = vld [vmem:[%s0 + $0x8] sm:$0xff]
    %v66 = vld [vmem:[%s2] sm:$0x1]
    %v67 = vld [vmem:[%s3] sm:$0x1]
    %vm68 = vcmask 261120
    %v69 = vsel %vm68, %v64, 0.0
    %70 = vadd.xlane.f32.xlu0 %v69
    %v71 = vpop.xlane.xlu0 %70
    %v72 = vsel %vm68, %v65, 0.0
    %73 = vadd.xlane.f32.xlu0 %v72
    %v74 = vpop.xlane.xlu0 %73
    %v75 = vrcp.pop 32.0
    %v76 = vmul.f32 %v71, %v75
    %v77 = vmul.f32 %v74, %v75
    %v78 = vsub.f32 %v64, %v76
    %v79 = vsub.f32 %v65, %v77
    %v80 = vmul.f32 %v78, %v78
    %v81 = vmul.f32 %v79, %v79
    %v82 = vsel %vm68, %v80, 0.0
    %83 = vadd.xlane.f32.xlu0 %v82
    %v84 = vpop.xlane.xlu0 %83
    %v85 = vsel %vm68, %v81, 0.0
    %86 = vadd.xlane.f32.xlu0 %v85
    %v87 = vpop.xlane.xlu0 %86
    %v88 = vmul.f32 %v84, %v75
    %v89 = vmul.f32 %v87, %v75
    %v90 = vadd.f32 %v88, 1e-12
    %v91 = vadd.f32 %v89, 1e-12
    %v92 = vrsqrt.pop %v90
    %v93 = vrsqrt.pop %v91
    %v94 = vmul.f32 %v78, %v92
    %v95 = vmul.f32 %v79, %v93
    %v97 = vlaneseq
    %v98 = vshrl.u32 %v97, 7
    %v99 = vsub.s32 0, %v98
    %v100 = vrot.slane %v66, %v99
    %v102 = vmul.f32 %v94, %v100
    %v103 = vmul.f32 %v95, %v100
    %v105 = vlaneseq
    %v106 = vshrl.u32 %v105, 7
    %v107 = vsub.s32 0, %v106
    %v108 = vrot.slane %v67, %v107
    %v110 = vadd.f32 %v102, %v108
    %v111 = vadd.f32 %v103, %v108
    %v112 = vld [vmem:[%s1] sm:$0x3]
    %v113 = vpack.c.bf16 %v111, %v110
    %v114 = vld [vmem:[%s4] sm:$0xf]
    %v115 = vld [vmem:[%s4 + $0x4] sm:$0xf]
    %v116 = vld [vmem:[%s4 + $0x8] sm:$0xf]
    %v117 = vld [vmem:[%s4 + $0xc] sm:$0xf]
    %v118 = vld [vmem:[%s5] sm:$0x1]
    %v120 = vlaneseq
    %v121 = vshrl.u32 %v120, 7
    %v122 = vsub.s32 0, %v121
    %v123 = vrot.slane %v118, %v122
    %v129 = vunpack.c.l.b16 %v114
    %v130 = vunpack.c.l.b16 %v115
    %v131 = vunpack.c.l.b16 %v116
    %v132 = vunpack.c.l.b16 %v117
    %v133 = vpack.c.b16 %v130, %v129
    %v134 = vpack.c.b16 %v132, %v131
    %v138 = vsel %vm68, %v113, 0
    %140 = vmatprep.subr.bf16.mxu0 0
    %141 = vmatpush1.bf16.msra.mxu0 %v133
    %142 = vmatprep.subr.bf16.mxu0 0
    %143 = vmatpush1.bf16.msra.mxu0 %v134
    %144 = vmatprep.subr.bf16.mxu0 0
    %145 = vmatpush1.bf16.msra.mxu0 0
    %146 = vmatprep.subr.bf16.mxu0 0
    %147 = vmatpush1.bf16.msra.mxu0 0
    %148 = vmatprep.subr.bf16.mxu0 0
    %149 = vmatpush1.bf16.msra.mxu0 0
    %150 = vmatprep.subr.bf16.mxu0 0
    %151 = vmatpush1.bf16.msra.mxu0 0
    %152 = vmatprep.subr.bf16.mxu0 0
    %153 = vmatpush1.bf16.msra.mxu0 0
    %154 = vmatprep.subr.bf16.mxu0 0
    %155 = vmatpush1.bf16.msra.mxu0 0
    %156 = vmatprep.subr.bf16.mxu0 0
    %157 = vmatpush1.bf16.msra.mxu0 0
    %158 = vmatprep.subr.bf16.mxu0 0
    %159 = vmatpush1.bf16.msra.mxu0 0
    %160 = vmatprep.subr.bf16.mxu0 0
    %161 = vmatpush1.bf16.msra.mxu0 0
    %162 = vmatprep.subr.bf16.mxu0 0
    %163 = vmatpush1.bf16.msra.mxu0 0
    %164 = vmatprep.subr.bf16.mxu0 0
    %165 = vmatpush1.bf16.msra.mxu0 0
    %166 = vmatprep.subr.bf16.mxu0 0
    %167 = vmatpush1.bf16.msra.mxu0 0
    %168 = vmatprep.subr.bf16.mxu0 0
    %169 = vmatpush1.bf16.msra.mxu0 0
    %170 = vmatprep.subr.bf16.mxu0 0
    %171 = vmatpush1.bf16.msra.mxu0 0
    %172 = vmatprep.mubr.bf16.mxu0 0
    %173 = vmatmul.mubr.bf16.gmra.mrb[0].mxu0 %v138
    %v174 = vpop.f32.mrb[0].mxu0
    %v175 = vadd.f32 %v123, %v174
    %v176 = vpop.f32.mrb[0].mxu0
    %v177 = vpop.f32.mrb[0].mxu0
    %v178 = vadd.f32 %v123, %v177
    %v179 = vpop.f32.mrb[0].mxu0
    %180 = vdwg.mxu0
    %181 = vst [vmem:[#allocation2] sm:$0xff] %v175
    %182 = vst [vmem:[#allocation2 + $0x8] sm:$0xff] %v178
    %v183 = vld [vmem:[#allocation2] sm:$0xff]
    %v184 = vpack.c.bf16 %v183, %v183
    %186 = vrot.lane.b32.xlu0 %v184, 96
    %v187 = vpop.permute.xlu0 %186
    %vm188 = vcmask 130048
    %v190 = vsel %vm188, %v184, 0
    %v193 = vsel %vm188, %v187, 0
    %195 = vmatprep.subr.bf16.mxu0 0
    %196 = vmatpush1.bf16.xpose.msra.mxu0 %v193
    %197 = vmatprep.subr.bf16.mxu0 0
    %198 = vmatpush1.bf16.xpose.msra.mxu0 0
    %199 = vmatprep.subr.bf16.mxu0 0
    %200 = vmatpush1.bf16.xpose.msra.mxu0 0
    %201 = vmatprep.subr.bf16.mxu0 0
    %202 = vmatpush1.bf16.xpose.msra.mxu0 0
    %203 = vmatprep.subr.bf16.mxu0 0
    %204 = vmatpush1.bf16.xpose.msra.mxu0 0
    %205 = vmatprep.subr.bf16.mxu0 0
    %206 = vmatpush1.bf16.xpose.msra.mxu0 0
    %207 = vmatprep.subr.bf16.mxu0 0
    %208 = vmatpush1.bf16.xpose.msra.mxu0 0
    %209 = vmatprep.subr.bf16.mxu0 0
    %210 = vmatpush1.bf16.xpose.msra.mxu0 0
    %211 = vmatprep.subr.bf16.mxu0 0
    %212 = vmatpush1.bf16.xpose.msra.mxu0 0
    %213 = vmatprep.subr.bf16.mxu0 0
    %214 = vmatpush1.bf16.xpose.msra.mxu0 0
    %215 = vmatprep.subr.bf16.mxu0 0
    %216 = vmatpush1.bf16.xpose.msra.mxu0 0
    %217 = vmatprep.subr.bf16.mxu0 0
    %218 = vmatpush1.bf16.xpose.msra.mxu0 0
    %219 = vmatprep.subr.bf16.mxu0 0
    %220 = vmatpush1.bf16.xpose.msra.mxu0 0
    %221 = vmatprep.subr.bf16.mxu0 0
    %222 = vmatpush1.bf16.xpose.msra.mxu0 0
    %223 = vmatprep.subr.bf16.mxu0 0
    %224 = vmatpush1.bf16.xpose.msra.mxu0 0
    %225 = vmatprep.subr.bf16.mxu0 0
    %226 = vmatpush1.bf16.xpose.msra.mxu0 0
    %227 = vmatprep.mubr.bf16.mxu0 0
    %228 = vmatmul.mubr.bf16.gmra.mrb[0].mxu0 %v190
    %v229 = vpop.f32.mrb[0].mxu0
    %v230 = vadd.f32 0.0, %v229
    %v231 = vpop.f32.mrb[0].mxu0
    %v232 = vpop.f32.mrb[0].mxu0
    %v233 = vpop.f32.mrb[0].mxu0
    %234 = vdwg.mxu0
    %v235 = vmul.f32 %v230, 0.25
    %v236 = vlaneseq
    %v237 = vshrl.u32 %v236, 7
    %v238 = vsub.s32 0, %v237
    %v239 = vrot.slane %v112, %v238
    %v240 = vadd.f32 %v235, %v239
    %vm241 = vcmask 64512
    %v242 = vsel %vm241, %v240, -inf
    %243 = vmax.xlane.f32.xlu0 %v242
    %v244 = vpop.xlane.xlu0 %243
    %v245 = vsub.f32 %v240, %v244
    %v246 = vmul.f32 %v245, 1.442695
    %v247 = vpow.pop %v246
    %v248 = vsel %vm241, %v247, 0.0
    %249 = vadd.xlane.f32.xlu0 %v248
    %v250 = vpop.xlane.xlu0 %249
    %v251 = vrcp.pop %v250
    %v252 = vmul.f32 %v247, %v251
    %v253 = vpack.c.bf16 %v252, %v252
    %254 = vrot.lane.b32.xlu0 %v184, 112
    %v255 = vpop.permute.xlu0 %254
    %256 = vrot.lane.b32.xlu0 %v184, 80
    %v257 = vpop.permute.xlu0 %256
    %v259 = vsel %vm188, %v255, 0
    %v262 = vsel %vm188, %v257, 0
    %264 = vmatprep.subr.bf16.mxu0 0
    %265 = vmatpush1.bf16.xpose.msra.mxu0 %v262
    %266 = vmatprep.subr.bf16.mxu0 0
    %267 = vmatpush1.bf16.xpose.msra.mxu0 0
    %268 = vmatprep.subr.bf16.mxu0 0
    %269 = vmatpush1.bf16.xpose.msra.mxu0 0
    %270 = vmatprep.subr.bf16.mxu0 0
    %271 = vmatpush1.bf16.xpose.msra.mxu0 0
    %272 = vmatprep.subr.bf16.mxu0 0
    %273 = vmatpush1.bf16.xpose.msra.mxu0 0
    %274 = vmatprep.subr.bf16.mxu0 0
    %275 = vmatpush1.bf16.xpose.msra.mxu0 0
    %276 = vmatprep.subr.bf16.mxu0 0
    %277 = vmatpush1.bf16.xpose.msra.mxu0 0
    %278 = vmatprep.subr.bf16.mxu0 0
    %279 = vmatpush1.bf16.xpose.msra.mxu0 0
    %280 = vmatprep.subr.bf16.mxu0 0
    %281 = vmatpush1.bf16.xpose.msra.mxu0 0
    %282 = vmatprep.subr.bf16.mxu0 0
    %283 = vmatpush1.bf16.xpose.msra.mxu0 0
    %284 = vmatprep.subr.bf16.mxu0 0
    %285 = vmatpush1.bf16.xpose.msra.mxu0 0
    %286 = vmatprep.subr.bf16.mxu0 0
    %287 = vmatpush1.bf16.xpose.msra.mxu0 0
    %288 = vmatprep.subr.bf16.mxu0 0
    %289 = vmatpush1.bf16.xpose.msra.mxu0 0
    %290 = vmatprep.subr.bf16.mxu0 0
    %291 = vmatpush1.bf16.xpose.msra.mxu0 0
    %292 = vmatprep.subr.bf16.mxu0 0
    %293 = vmatpush1.bf16.xpose.msra.mxu0 0
    %294 = vmatprep.subr.bf16.mxu0 0
    %295 = vmatpush1.bf16.xpose.msra.mxu0 0
    %296 = vmatprep.mubr.bf16.mxu0 0
    %297 = vmatmul.mubr.bf16.gmra.mrb[0].mxu0 %v259
    %v298 = vpop.f32.mrb[0].mxu0
    %v299 = vadd.f32 0.0, %v298
    %v300 = vpop.f32.mrb[0].mxu0
    %v301 = vpop.f32.mrb[0].mxu0
    %v302 = vpop.f32.mrb[0].mxu0
    %303 = vdwg.mxu0
    %v304 = vmul.f32 %v299, 0.25
    %v305 = vadd.f32 %v304, %v239
    %v306 = vsel %vm241, %v305, -inf
    %307 = vmax.xlane.f32.xlu0 %v306
    %v308 = vpop.xlane.xlu0 %307
    %v309 = vsub.f32 %v305, %v308
    %v310 = vmul.f32 %v309, 1.442695
    %v311 = vpow.pop %v310
    %v312 = vsel %vm241, %v311, 0.0
    %313 = vadd.xlane.f32.xlu0 %v312
    %v314 = vpop.xlane.xlu0 %313
    %v315 = vrcp.pop %v314
    %v316 = vmul.f32 %v311, %v315
    %v317 = vpack.c.bf16 %v316, %v316
    %318 = vrot.lane.b32.xlu0 %v184, 32
    %v319 = vpop.permute.xlu0 %318
    %v321 = vsel %vm241, %v317, 0
    %vm323 = vcmask 1043456
    %v325 = vsel %vm323, %v319, 0
    %327 = vmatprep.subr.bf16.mxu0 0
    %328 = vmatpush1.bf16.msra.mxu0 %v325
    %329 = vmatprep.subr.bf16.mxu0 0
    %330 = vmatpush1.bf16.msra.mxu0 0
    %331 = vmatprep.subr.bf16.mxu0 0
    %332 = vmatpush1.bf16.msra.mxu0 0
    %333 = vmatprep.subr.bf16.mxu0 0
    %334 = vmatpush1.bf16.msra.mxu0 0
    %335 = vmatprep.subr.bf16.mxu0 0
    %336 = vmatpush1.bf16.msra.mxu0 0
    %337 = vmatprep.subr.bf16.mxu0 0
    %338 = vmatpush1.bf16.msra.mxu0 0
    %339 = vmatprep.subr.bf16.mxu0 0
    %340 = vmatpush1.bf16.msra.mxu0 0
    %341 = vmatprep.subr.bf16.mxu0 0
    %342 = vmatpush1.bf16.msra.mxu0 0
    %343 = vmatprep.subr.bf16.mxu0 0
    %344 = vmatpush1.bf16.msra.mxu0 0
    %345 = vmatprep.subr.bf16.mxu0 0
    %346 = vmatpush1.bf16.msra.mxu0 0
    %347 = vmatprep.subr.bf16.mxu0 0
    %348 = vmatpush1.bf16.msra.mxu0 0
    %349 = vmatprep.subr.bf16.mxu0 0
    %350 = vmatpush1.bf16.msra.mxu0 0
    %351 = vmatprep.subr.bf16.mxu0 0
    %352 = vmatpush1.bf16.msra.mxu0 0
    %353 = vmatprep.subr.bf16.mxu0 0
    %354 = vmatpush1.bf16.msra.mxu0 0
    %355 = vmatprep.subr.bf16.mxu0 0
    %356 = vmatpush1.bf16.msra.mxu0 0
    %357 = vmatprep.subr.bf16.mxu0 0
    %358 = vmatpush1.bf16.msra.mxu0 0
    %359 = vmatprep.mubr.bf16.mxu0 0
    %360 = vmatmul.mubr.bf16.gmra.mrb[0].mxu0 %v321
    %v361 = vpop.f32.mrb[0].mxu0
    %v362 = vadd.f32 0.0, %v361
    %v363 = vpop.f32.mrb[0].mxu0
    %v364 = vpop.f32.mrb[0].mxu0
    %v365 = vpop.f32.mrb[0].mxu0
    %366 = vdwg.mxu0
    %367 = vrot.lane.b32.xlu0 %v184, 64
    %v368 = vpop.permute.xlu0 %367
    %v370 = vsel %vm241, %v253, 0
    %v373 = vsel %vm323, %v368, 0
    %375 = vmatprep.subr.bf16.mxu0 0
    %376 = vmatpush1.bf16.msra.mxu0 %v373
    %377 = vmatprep.subr.bf16.mxu0 0
    %378 = vmatpush1.bf16.msra.mxu0 0
    %379 = vmatprep.subr.bf16.mxu0 0
    %380 = vmatpush1.bf16.msra.mxu0 0
    %381 = vmatprep.subr.bf16.mxu0 0
    %382 = vmatpush1.bf16.msra.mxu0 0
    %383 = vmatprep.subr.bf16.mxu0 0
    %384 = vmatpush1.bf16.msra.mxu0 0
    %385 = vmatprep.subr.bf16.mxu0 0
    %386 = vmatpush1.bf16.msra.mxu0 0
    %387 = vmatprep.subr.bf16.mxu0 0
    %388 = vmatpush1.bf16.msra.mxu0 0
    %389 = vmatprep.subr.bf16.mxu0 0
    %390 = vmatpush1.bf16.msra.mxu0 0
    %391 = vmatprep.subr.bf16.mxu0 0
    %392 = vmatpush1.bf16.msra.mxu0 0
    %393 = vmatprep.subr.bf16.mxu0 0
    %394 = vmatpush1.bf16.msra.mxu0 0
    %395 = vmatprep.subr.bf16.mxu0 0
    %396 = vmatpush1.bf16.msra.mxu0 0
    %397 = vmatprep.subr.bf16.mxu0 0
    %398 = vmatpush1.bf16.msra.mxu0 0
    %399 = vmatprep.subr.bf16.mxu0 0
    %400 = vmatpush1.bf16.msra.mxu0 0
    %401 = vmatprep.subr.bf16.mxu0 0
    %402 = vmatpush1.bf16.msra.mxu0 0
    %403 = vmatprep.subr.bf16.mxu0 0
    %404 = vmatpush1.bf16.msra.mxu0 0
    %405 = vmatprep.subr.bf16.mxu0 0
    %406 = vmatpush1.bf16.msra.mxu0 0
    %407 = vmatprep.mubr.bf16.mxu0 0
    %408 = vmatmul.mubr.bf16.gmra.mrb[0].mxu0 %v370
    %v409 = vpop.f32.mrb[0].mxu0
    %v410 = vadd.f32 %v362, %v409
    %v411 = vpop.f32.mrb[0].mxu0
    %v412 = vpop.f32.mrb[0].mxu0
    %v413 = vpop.f32.mrb[0].mxu0
    %414 = vdwg.mxu0
    %415 = vst.msk [vmem:[#allocation3] sm:$0xff] %vm68, %v410
    %v416 = vld [vmem:[#allocation2 + $0x8] sm:$0xff]
    %v417 = vpack.c.bf16 %v416, %v416
    %419 = vrot.lane.b32.xlu0 %v417, 96
    %v420 = vpop.permute.xlu0 %419
    %v422 = vsel %vm188, %v417, 0
    %v425 = vsel %vm188, %v420, 0
    %427 = vmatprep.subr.bf16.mxu0 0
    %428 = vmatpush1.bf16.xpose.msra.mxu0 %v425
    %429 = vmatprep.subr.bf16.mxu0 0
    %430 = vmatpush1.bf16.xpose.msra.mxu0 0
    %431 = vmatprep.subr.bf16.mxu0 0
    %432 = vmatpush1.bf16.xpose.msra.mxu0 0
    %433 = vmatprep.subr.bf16.mxu0 0
    %434 = vmatpush1.bf16.xpose.msra.mxu0 0
    %435 = vmatprep.subr.bf16.mxu0 0
    %436 = vmatpush1.bf16.xpose.msra.mxu0 0
    %437 = vmatprep.subr.bf16.mxu0 0
    %438 = vmatpush1.bf16.xpose.msra.mxu0 0
    %439 = vmatprep.subr.bf16.mxu0 0
    %440 = vmatpush1.bf16.xpose.msra.mxu0 0
    %441 = vmatprep.subr.bf16.mxu0 0
    %442 = vmatpush1.bf16.xpose.msra.mxu0 0
    %443 = vmatprep.subr.bf16.mxu0 0
    %444 = vmatpush1.bf16.xpose.msra.mxu0 0
    %445 = vmatprep.subr.bf16.mxu0 0
    %446 = vmatpush1.bf16.xpose.msra.mxu0 0
    %447 = vmatprep.subr.bf16.mxu0 0
    %448 = vmatpush1.bf16.xpose.msra.mxu0 0
    %449 = vmatprep.subr.bf16.mxu0 0
    %450 = vmatpush1.bf16.xpose.msra.mxu0 0
    %451 = vmatprep.subr.bf16.mxu0 0
    %452 = vmatpush1.bf16.xpose.msra.mxu0 0
    %453 = vmatprep.subr.bf16.mxu0 0
    %454 = vmatpush1.bf16.xpose.msra.mxu0 0
    %455 = vmatprep.subr.bf16.mxu0 0
    %456 = vmatpush1.bf16.xpose.msra.mxu0 0
    %457 = vmatprep.subr.bf16.mxu0 0
    %458 = vmatpush1.bf16.xpose.msra.mxu0 0
    %459 = vmatprep.mubr.bf16.mxu0 0
    %460 = vmatmul.mubr.bf16.gmra.mrb[0].mxu0 %v422
    %v461 = vpop.f32.mrb[0].mxu0
    %v462 = vadd.f32 0.0, %v461
    %v463 = vpop.f32.mrb[0].mxu0
    %v464 = vpop.f32.mrb[0].mxu0
    %v465 = vpop.f32.mrb[0].mxu0
    %466 = vdwg.mxu0
    %v467 = vmul.f32 %v462, 0.25
    %v468 = vlaneseq
    %v469 = vshrl.u32 %v468, 7
    %v470 = vsub.s32 1, %v469
    %v471 = vrot.slane %v112, %v470
    %v472 = vadd.f32 %v467, %v471
    %v473 = vsel %vm241, %v472, -inf
    %474 = vmax.xlane.f32.xlu0 %v473
    %v475 = vpop.xlane.xlu0 %474
    %v476 = vsub.f32 %v472, %v475
    %v477 = vmul.f32 %v476, 1.442695
    %v478 = vpow.pop %v477
    %v479 = vsel %vm241, %v478, 0.0
    %480 = vadd.xlane.f32.xlu0 %v479
    %v481 = vpop.xlane.xlu0 %480
    %v482 = vrcp.pop %v481
    %v483 = vmul.f32 %v478, %v482
    %v484 = vpack.c.bf16 %v483, %v483
    %485 = vrot.lane.b32.xlu0 %v417, 112
    %v486 = vpop.permute.xlu0 %485
    %487 = vrot.lane.b32.xlu0 %v417, 80
    %v488 = vpop.permute.xlu0 %487
    %v490 = vsel %vm188, %v486, 0
    %v493 = vsel %vm188, %v488, 0
    %495 = vmatprep.subr.bf16.mxu0 0
    %496 = vmatpush1.bf16.xpose.msra.mxu0 %v493
    %497 = vmatprep.subr.bf16.mxu0 0
    %498 = vmatpush1.bf16.xpose.msra.mxu0 0
    %499 = vmatprep.subr.bf16.mxu0 0
    %500 = vmatpush1.bf16.xpose.msra.mxu0 0
    %501 = vmatprep.subr.bf16.mxu0 0
    %502 = vmatpush1.bf16.xpose.msra.mxu0 0
    %503 = vmatprep.subr.bf16.mxu0 0
    %504 = vmatpush1.bf16.xpose.msra.mxu0 0
    %505 = vmatprep.subr.bf16.mxu0 0
    %506 = vmatpush1.bf16.xpose.msra.mxu0 0
    %507 = vmatprep.subr.bf16.mxu0 0
    %508 = vmatpush1.bf16.xpose.msra.mxu0 0
    %509 = vmatprep.subr.bf16.mxu0 0
    %510 = vmatpush1.bf16.xpose.msra.mxu0 0
    %511 = vmatprep.subr.bf16.mxu0 0
    %512 = vmatpush1.bf16.xpose.msra.mxu0 0
    %513 = vmatprep.subr.bf16.mxu0 0
    %514 = vmatpush1.bf16.xpose.msra.mxu0 0
    %515 = vmatprep.subr.bf16.mxu0 0
    %516 = vmatpush1.bf16.xpose.msra.mxu0 0
    %517 = vmatprep.subr.bf16.mxu0 0
    %518 = vmatpush1.bf16.xpose.msra.mxu0 0
    %519 = vmatprep.subr.bf16.mxu0 0
    %520 = vmatpush1.bf16.xpose.msra.mxu0 0
    %521 = vmatprep.subr.bf16.mxu0 0
    %522 = vmatpush1.bf16.xpose.msra.mxu0 0
    %523 = vmatprep.subr.bf16.mxu0 0
    %524 = vmatpush1.bf16.xpose.msra.mxu0 0
    %525 = vmatprep.subr.bf16.mxu0 0
    %526 = vmatpush1.bf16.xpose.msra.mxu0 0
    %527 = vmatprep.mubr.bf16.mxu0 0
    %528 = vmatmul.mubr.bf16.gmra.mrb[0].mxu0 %v490
    %v529 = vpop.f32.mrb[0].mxu0
    %v530 = vadd.f32 0.0, %v529
    %v531 = vpop.f32.mrb[0].mxu0
    %v532 = vpop.f32.mrb[0].mxu0
    %v533 = vpop.f32.mrb[0].mxu0
    %534 = vdwg.mxu0
    %v535 = vmul.f32 %v530, 0.25
    %v536 = vadd.f32 %v535, %v471
    %v537 = vsel %vm241, %v536, -inf
    %538 = vmax.xlane.f32.xlu0 %v537
    %v539 = vpop.xlane.xlu0 %538
    %v540 = vsub.f32 %v536, %v539
    %v541 = vmul.f32 %v540, 1.442695
    %v542 = vpow.pop %v541
    %v543 = vsel %vm241, %v542, 0.0
    %544 = vadd.xlane.f32.xlu0 %v543
    %v545 = vpop.xlane.xlu0 %544
    %v546 = vrcp.pop %v545
    %v547 = vmul.f32 %v542, %v546
    %v548 = vpack.c.bf16 %v547, %v547
    %549 = vrot.lane.b32.xlu0 %v417, 32
    %v550 = vpop.permute.xlu0 %549
    %v552 = vsel %vm241, %v548, 0
    %v555 = vsel %vm323, %v550, 0
    %557 = vmatprep.subr.bf16.mxu0 0
    %558 = vmatpush1.bf16.msra.mxu0 %v555
    %559 = vmatprep.subr.bf16.mxu0 0
    %560 = vmatpush1.bf16.msra.mxu0 0
    %561 = vmatprep.subr.bf16.mxu0 0
    %562 = vmatpush1.bf16.msra.mxu0 0
    %563 = vmatprep.subr.bf16.mxu0 0
    %564 = vmatpush1.bf16.msra.mxu0 0
    %565 = vmatprep.subr.bf16.mxu0 0
    %566 = vmatpush1.bf16.msra.mxu0 0
    %567 = vmatprep.subr.bf16.mxu0 0
    %568 = vmatpush1.bf16.msra.mxu0 0
    %569 = vmatprep.subr.bf16.mxu0 0
    %570 = vmatpush1.bf16.msra.mxu0 0
    %571 = vmatprep.subr.bf16.mxu0 0
    %572 = vmatpush1.bf16.msra.mxu0 0
    %573 = vmatprep.subr.bf16.mxu0 0
    %574 = vmatpush1.bf16.msra.mxu0 0
    %575 = vmatprep.subr.bf16.mxu0 0
    %576 = vmatpush1.bf16.msra.mxu0 0
    %577 = vmatprep.subr.bf16.mxu0 0
    %578 = vmatpush1.bf16.msra.mxu0 0
    %579 = vmatprep.subr.bf16.mxu0 0
    %580 = vmatpush1.bf16.msra.mxu0 0
    %581 = vmatprep.subr.bf16.mxu0 0
    %582 = vmatpush1.bf16.msra.mxu0 0
    %583 = vmatprep.subr.bf16.mxu0 0
    %584 = vmatpush1.bf16.msra.mxu0 0
    %585 = vmatprep.subr.bf16.mxu0 0
    %586 = vmatpush1.bf16.msra.mxu0 0
    %587 = vmatprep.subr.bf16.mxu0 0
    %588 = vmatpush1.bf16.msra.mxu0 0
    %589 = vmatprep.mubr.bf16.mxu0 0
    %590 = vmatmul.mubr.bf16.gmra.mrb[0].mxu0 %v552
    %v591 = vpop.f32.mrb[0].mxu0
    %v592 = vadd.f32 0.0, %v591
    %v593 = vpop.f32.mrb[0].mxu0
    %v594 = vpop.f32.mrb[0].mxu0
    %v595 = vpop.f32.mrb[0].mxu0
    %596 = vdwg.mxu0
    %597 = vrot.lane.b32.xlu0 %v417, 64
    %v598 = vpop.permute.xlu0 %597
    %v600 = vsel %vm241, %v484, 0
    %v603 = vsel %vm323, %v598, 0
    %605 = vmatprep.subr.bf16.mxu0 0
    %606 = vmatpush1.bf16.msra.mxu0 %v603
    %607 = vmatprep.subr.bf16.mxu0 0
    %608 = vmatpush1.bf16.msra.mxu0 0
    %609 = vmatprep.subr.bf16.mxu0 0
    %610 = vmatpush1.bf16.msra.mxu0 0
    %611 = vmatprep.subr.bf16.mxu0 0
    %612 = vmatpush1.bf16.msra.mxu0 0
    %613 = vmatprep.subr.bf16.mxu0 0
    %614 = vmatpush1.bf16.msra.mxu0 0
    %615 = vmatprep.subr.bf16.mxu0 0
    %616 = vmatpush1.bf16.msra.mxu0 0
    %617 = vmatprep.subr.bf16.mxu0 0
    %618 = vmatpush1.bf16.msra.mxu0 0
    %619 = vmatprep.subr.bf16.mxu0 0
    %620 = vmatpush1.bf16.msra.mxu0 0
    %621 = vmatprep.subr.bf16.mxu0 0
    %622 = vmatpush1.bf16.msra.mxu0 0
    %623 = vmatprep.subr.bf16.mxu0 0
    %624 = vmatpush1.bf16.msra.mxu0 0
    %625 = vmatprep.subr.bf16.mxu0 0
    %626 = vmatpush1.bf16.msra.mxu0 0
    %627 = vmatprep.subr.bf16.mxu0 0
    %628 = vmatpush1.bf16.msra.mxu0 0
    %629 = vmatprep.subr.bf16.mxu0 0
    %630 = vmatpush1.bf16.msra.mxu0 0
    %631 = vmatprep.subr.bf16.mxu0 0
    %632 = vmatpush1.bf16.msra.mxu0 0
    %633 = vmatprep.subr.bf16.mxu0 0
    %634 = vmatpush1.bf16.msra.mxu0 0
    %635 = vmatprep.subr.bf16.mxu0 0
    %636 = vmatpush1.bf16.msra.mxu0 0
    %637 = vmatprep.mubr.bf16.mxu0 0
    %638 = vmatmul.mubr.bf16.gmra.mrb[0].mxu0 %v600
    %v639 = vpop.f32.mrb[0].mxu0
    %v640 = vadd.f32 %v592, %v639
    %v641 = vpop.f32.mrb[0].mxu0
    %v642 = vpop.f32.mrb[0].mxu0
    %v643 = vpop.f32.mrb[0].mxu0
    %644 = vdwg.mxu0
    %645 = vst.msk [vmem:[#allocation3 + $0x8] sm:$0xff] %vm68, %v640
    %v646 = vld [vmem:[#allocation3] sm:$0xff]
    %v647 = vld [vmem:[#allocation3 + $0x8] sm:$0xff]
    %v648 = vld [vmem:[%s6] sm:$0x1]
    %v650 = vlaneseq
    %v651 = vshrl.u32 %v650, 7
    %v652 = vsub.s32 0, %v651
    %v653 = vrot.slane %v648, %v652
    %v655 = vadd.f32 %v646, %v653
    %v656 = vadd.f32 %v647, %v653
    %v657 = vadd.f32 %v655, %v110
    %v658 = vadd.f32 %v656, %v111
    %v659 = vld [vmem:[%s7] sm:$0x1]
    %v660 = vld [vmem:[%s8] sm:$0x1]
    %v661 = vsel %vm68, %v657, 0.0
    %662 = vadd.xlane.f32.xlu0 %v661
    %v663 = vpop.xlane.xlu0 %662
    %v664 = vsel %vm68, %v658, 0.0
    %665 = vadd.xlane.f32.xlu0 %v664
    %v666 = vpop.xlane.xlu0 %665
    %v667 = vmul.f32 %v663, %v75
    %v668 = vmul.f32 %v666, %v75
    %v669 = vsub.f32 %v657, %v667
    %v670 = vsub.f32 %v658, %v668
    %v671 = vmul.f32 %v669, %v669
    %v672 = vmul.f32 %v670, %v670
    %v673 = vsel %vm68, %v671, 0.0
    %674 = vadd.xlane.f32.xlu0 %v673
    %v675 = vpop.xlane.xlu0 %674
    %v676 = vsel %vm68, %v672, 0.0
    %677 = vadd.xlane.f32.xlu0 %v676
    %v678 = vpop.xlane.xlu0 %677
    %v679 = vmul.f32 %v675, %v75
    %v680 = vmul.f32 %v678, %v75
    %v681 = vadd.f32 %v679, 1e-12
    %v682 = vadd.f32 %v680, 1e-12
    %v683 = vrsqrt.pop %v681
    %v684 = vrsqrt.pop %v682
    %v685 = vmul.f32 %v669, %v683
    %v686 = vmul.f32 %v670, %v684
    %v688 = vlaneseq
    %v689 = vshrl.u32 %v688, 7
    %v690 = vsub.s32 0, %v689
    %v691 = vrot.slane %v659, %v690
    %v693 = vmul.f32 %v685, %v691
    %v694 = vmul.f32 %v686, %v691
    %v696 = vlaneseq
    %v697 = vshrl.u32 %v696, 7
    %v698 = vsub.s32 0, %v697
    %v699 = vrot.slane %v660, %v698
    %v701 = vadd.f32 %v693, %v699
    %v702 = vadd.f32 %v694, %v699
    %v703 = vpack.c.bf16 %v702, %v701
    %v704 = vld [vmem:[%s9] sm:$0xf]
    %v705 = vld [vmem:[%s9 + $0x4] sm:$0xf]
    %v706 = vld [vmem:[%s9 + $0x8] sm:$0xf]
    %v707 = vld [vmem:[%s9 + $0xc] sm:$0xf]
    %v708 = vld [vmem:[%s10] sm:$0x1]
    %v710 = vlaneseq
    %v711 = vshrl.u32 %v710, 7
    %v712 = vsub.s32 0, %v711
    %v713 = vrot.slane %v708, %v712
    %v719 = vunpack.c.l.b16 %v704
    %v720 = vunpack.c.l.b16 %v705
    %v721 = vunpack.c.l.b16 %v706
    %v722 = vunpack.c.l.b16 %v707
    %v723 = vpack.c.b16 %v720, %v719
    %v724 = vpack.c.b16 %v722, %v721
    %v728 = vsel %vm68, %v703, 0
    %730 = vmatprep.subr.bf16.mxu0 0
    %731 = vmatpush1.bf16.msra.mxu0 %v723
    %732 = vmatprep.subr.bf16.mxu0 0
    %733 = vmatpush1.bf16.msra.mxu0 %v724
    %734 = vmatprep.subr.bf16.mxu0 0
    %735 = vmatpush1.bf16.msra.mxu0 0
    %736 = vmatprep.subr.bf16.mxu0 0
    %737 = vmatpush1.bf16.msra.mxu0 0
    %738 = vmatprep.subr.bf16.mxu0 0
    %739 = vmatpush1.bf16.msra.mxu0 0
    %740 = vmatprep.subr.bf16.mxu0 0
    %741 = vmatpush1.bf16.msra.mxu0 0
    %742 = vmatprep.subr.bf16.mxu0 0
    %743 = vmatpush1.bf16.msra.mxu0 0
    %744 = vmatprep.subr.bf16.mxu0 0
    %745 = vmatpush1.bf16.msra.mxu0 0
    %746 = vmatprep.subr.bf16.mxu0 0
    %747 = vmatpush1.bf16.msra.mxu0 0
    %748 = vmatprep.subr.bf16.mxu0 0
    %749 = vmatpush1.bf16.msra.mxu0 0
    %750 = vmatprep.subr.bf16.mxu0 0
    %751 = vmatpush1.bf16.msra.mxu0 0
    %752 = vmatprep.subr.bf16.mxu0 0
    %753 = vmatpush1.bf16.msra.mxu0 0
    %754 = vmatprep.subr.bf16.mxu0 0
    %755 = vmatpush1.bf16.msra.mxu0 0
    %756 = vmatprep.subr.bf16.mxu0 0
    %757 = vmatpush1.bf16.msra.mxu0 0
    %758 = vmatprep.subr.bf16.mxu0 0
    %759 = vmatpush1.bf16.msra.mxu0 0
    %760 = vmatprep.subr.bf16.mxu0 0
    %761 = vmatpush1.bf16.msra.mxu0 0
    %762 = vmatprep.mubr.bf16.mxu0 0
    %763 = vmatmul.mubr.bf16.gmra.mrb[0].mxu0 %v728
    %v764 = vpop.f32.mrb[0].mxu0
    %v765 = vadd.f32 %v713, %v764
    %v766 = vpop.f32.mrb[0].mxu0
    %v767 = vpop.f32.mrb[0].mxu0
    %v768 = vadd.f32 %v713, %v767
    %v769 = vpop.f32.mrb[0].mxu0
    %770 = vdwg.mxu0
    %v771 = vmul.f32 %v765, 0.5
    %v772 = vmul.f32 %v768, 0.5
    %v773 = vmul.f32 %v765, 0.044715
    %v774 = vmul.f32 %v768, 0.044715
    %v775 = vmul.f32 %v773, %v765
    %v776 = vmul.f32 %v774, %v768
    %v777 = vmul.f32 %v775, %v765
    %v778 = vmul.f32 %v776, %v768
    %v779 = vadd.f32 %v765, %v777
    %v780 = vadd.f32 %v768, %v778
    %v781 = vmul.f32 %v779, 0.7978846
    %v782 = vmul.f32 %v780, 0.7978846
    %v783 = vtanh.pop %v781
    %v784 = vtanh.pop %v782
    %v785 = vadd.f32 %v783, 1.0
    %v786 = vadd.f32 %v784, 1.0
    %v787 = vmul.f32 %v771, %v785
    %v788 = vmul.f32 %v772, %v786
    %v789 = vpack.c.bf16 %v788, %v787
    %v790 = vld [vmem:[%s11] sm:$0xf]
    %v791 = vld [vmem:[%s11 + $0x4] sm:$0xf]
    %v792 = vld [vmem:[%s11 + $0x8] sm:$0xf]
    %v793 = vld [vmem:[%s11 + $0xc] sm:$0xf]
    %v794 = vld [vmem:[%s11 + $0x10] sm:$0xf]
    %v795 = vld [vmem:[%s11 + $0x14] sm:$0xf]
    %v796 = vld [vmem:[%s11 + $0x18] sm:$0xf]
    %v797 = vld [vmem:[%s11 + $0x1c] sm:$0xf]
    %v798 = vld [vmem:[%s12] sm:$0x1]
    %v800 = vlaneseq
    %v801 = vshrl.u32 %v800, 7
    %v802 = vsub.s32 0, %v801
    %v803 = vrot.slane %v798, %v802
    %v813 = vunpack.c.l.b16 %v790
    %v814 = vunpack.c.l.b16 %v791
    %v815 = vunpack.c.l.b16 %v792
    %v816 = vunpack.c.l.b16 %v793
    %v817 = vunpack.c.l.b16 %v794
    %v818 = vunpack.c.l.b16 %v795
    %v819 = vunpack.c.l.b16 %v796
    %v820 = vunpack.c.l.b16 %v797
    %v821 = vpack.c.b16 %v814, %v813
    %v822 = vpack.c.b16 %v816, %v815
    %v823 = vpack.c.b16 %v818, %v817
    %v824 = vpack.c.b16 %v820, %v819
    %vm829 = vcmask 523264
    %v831 = vsel %vm829, %v789, 0
    %833 = vmatprep.subr.bf16.mxu0 0
    %834 = vmatpush1.bf16.msra.mxu0 %v821
    %835 = vmatprep.subr.bf16.mxu0 0
    %836 = vmatpush1.bf16.msra.mxu0 %v822
    %837 = vmatprep.subr.bf16.mxu0 0
    %838 = vmatpush1.bf16.msra.mxu0 %v823
    %839 = vmatprep.subr.bf16.mxu0 0
    %840 = vmatpush1.bf16.msra.mxu0 %v824
    %841 = vmatprep.subr.bf16.mxu0 0
    %842 = vmatpush1.bf16.msra.mxu0 0
    %843 = vmatprep.subr.bf16.mxu0 0
    %844 = vmatpush1.bf16.msra.mxu0 0
    %845 = vmatprep.subr.bf16.mxu0 0
    %846 = vmatpush1.bf16.msra.mxu0 0
    %847 = vmatprep.subr.bf16.mxu0 0
    %848 = vmatpush1.bf16.msra.mxu0 0
    %849 = vmatprep.subr.bf16.mxu0 0
    %850 = vmatpush1.bf16.msra.mxu0 0
    %851 = vmatprep.subr.bf16.mxu0 0
    %852 = vmatpush1.bf16.msra.mxu0 0
    %853 = vmatprep.subr.bf16.mxu0 0
    %854 = vmatpush1.bf16.msra.mxu0 0
    %855 = vmatprep.subr.bf16.mxu0 0
    %856 = vmatpush1.bf16.msra.mxu0 0
    %857 = vmatprep.subr.bf16.mxu0 0
    %858 = vmatpush1.bf16.msra.mxu0 0
    %859 = vmatprep.subr.bf16.mxu0 0
    %860 = vmatpush1.bf16.msra.mxu0 0
    %861 = vmatprep.subr.bf16.mxu0 0
    %862 = vmatpush1.bf16.msra.mxu0 0
    %863 = vmatprep.subr.bf16.mxu0 0
    %864 = vmatpush1.bf16.msra.mxu0 0
    %865 = vmatprep.mubr.bf16.mxu0 0
    %866 = vmatmul.mubr.bf16.gmra.mrb[0].mxu0 %v831
    %v867 = vpop.f32.mrb[0].mxu0
    %v868 = vadd.f32 %v803, %v867
    %v869 = vpop.f32.mrb[0].mxu0
    %v870 = vpop.f32.mrb[0].mxu0
    %v871 = vadd.f32 %v803, %v870
    %v872 = vpop.f32.mrb[0].mxu0
    %873 = vdwg.mxu0
    %v874 = vadd.f32 %v868, %v701
    %v875 = vadd.f32 %v871, %v702
    %v876 = vld [vmem:[%s13] sm:$0x1]
    %v877 = vld [vmem:[%s14] sm:$0x1]
    %v878 = vsel %vm68, %v874, 0.0
    %879 = vadd.xlane.f32.xlu0 %v878
    %v880 = vpop.xlane.xlu0 %879
    %v881 = vsel %vm68, %v875, 0.0
    %882 = vadd.xlane.f32.xlu0 %v881
    %v883 = vpop.xlane.xlu0 %882
    %v884 = vmul.f32 %v880, %v75
    %v885 = vmul.f32 %v883, %v75
    %v886 = vsub.f32 %v874, %v884
    %v887 = vsub.f32 %v875, %v885
    %v888 = vmul.f32 %v886, %v886
    %v889 = vmul.f32 %v887, %v887
    %v890 = vsel %vm68, %v888, 0.0
    %891 = vadd.xlane.f32.xlu0 %v890
    %v892 = vpop.xlane.xlu0 %891
    %v893 = vsel %vm68, %v889, 0.0
    %894 = vadd.xlane.f32.xlu0 %v893
    %v895 = vpop.xlane.xlu0 %894
    %v896 = vmul.f32 %v892, %v75
    %v897 = vmul.f32 %v895, %v75
    %v898 = vadd.f32 %v896, 1e-12
    %v899 = vadd.f32 %v897, 1e-12
    %v900 = vrsqrt.pop %v898
    %v901 = vrsqrt.pop %v899
    %v902 = vmul.f32 %v886, %v900
    %v903 = vmul.f32 %v887, %v901
    %v905 = vlaneseq
    %v906 = vshrl.u32 %v905, 7
    %v907 = vsub.s32 0, %v906
    %v908 = vrot.slane %v876, %v907
    %v910 = vmul.f32 %v902, %v908
    %v911 = vmul.f32 %v903, %v908
    %v913 = vlaneseq
    %v914 = vshrl.u32 %v913, 7
    %v915 = vsub.s32 0, %v914
    %v916 = vrot.slane %v877, %v915
    %v918 = vadd.f32 %v910, %v916
    %v919 = vadd.f32 %v911, %v916
    %v920 = vpack.c.bf16 %v919, %v918
    %s921 = scalar_lea.vmem %s4, 16
    %v922 = vld [vmem:[%s921] sm:$0xf]
    %v923 = vld [vmem:[%s921 + $0x4] sm:$0xf]
    %v924 = vld [vmem:[%s921 + $0x8] sm:$0xf]
    %v925 = vld [vmem:[%s921 + $0xc] sm:$0xf]
    %s926 = scalar_lea.vmem %s5, 1
    %v927 = vld [vmem:[%s926] sm:$0x1]
    %v929 = vlaneseq
    %v930 = vshrl.u32 %v929, 7
    %v931 = vsub.s32 0, %v930
    %v932 = vrot.slane %v927, %v931
    %v938 = vunpack.c.l.b16 %v922
    %v939 = vunpack.c.l.b16 %v923
    %v940 = vunpack.c.l.b16 %v924
    %v941 = vunpack.c.l.b16 %v925
    %v942 = vpack.c.b16 %v939, %v938
    %v943 = vpack.c.b16 %v941, %v940
    %v947 = vsel %vm68, %v920, 0
    %949 = vmatprep.subr.bf16.mxu0 0
    %950 = vmatpush1.bf16.msra.mxu0 %v942
    %951 = vmatprep.subr.bf16.mxu0 0
    %952 = vmatpush1.bf16.msra.mxu0 %v943
    %953 = vmatprep.subr.bf16.mxu0 0
    %954 = vmatpush1.bf16.msra.mxu0 0
    %955 = vmatprep.subr.bf16.mxu0 0
    %956 = vmatpush1.bf16.msra.mxu0 0
    %957 = vmatprep.subr.bf16.mxu0 0
    %958 = vmatpush1.bf16.msra.mxu0 0
    %959 = vmatprep.subr.bf16.mxu0 0
    %960 = vmatpush1.bf16.msra.mxu0 0
    %961 = vmatprep.subr.bf16.mxu0 0
    %962 = vmatpush1.bf16.msra.mxu0 0
    %963 = vmatprep.subr.bf16.mxu0 0
    %964 = vmatpush1.bf16.msra.mxu0 0
    %965 = vmatprep.subr.bf16.mxu0 0
    %966 = vmatpush1.bf16.msra.mxu0 0
    %967 = vmatprep.subr.bf16.mxu0 0
    %968 = vmatpush1.bf16.msra.mxu0 0
    %969 = vmatprep.subr.bf16.mxu0 0
    %970 = vmatpush1.bf16.msra.mxu0 0
    %971 = vmatprep.subr.bf16.mxu0 0
    %972 = vmatpush1.bf16.msra.mxu0 0
    %973 = vmatprep.subr.bf16.mxu0 0
    %974 = vmatpush1.bf16.msra.mxu0 0
    %975 = vmatprep.subr.bf16.mxu0 0
    %976 = vmatpush1.bf16.msra.mxu0 0
    %977 = vmatprep.subr.bf16.mxu0 0
    %978 = vmatpush1.bf16.msra.mxu0 0
    %979 = vmatprep.subr.bf16.mxu0 0
    %980 = vmatpush1.bf16.msra.mxu0 0
    %981 = vmatprep.mubr.bf16.mxu0 0
    %982 = vmatmul.mubr.bf16.gmra.mrb[0].mxu0 %v947
    %v983 = vpop.f32.mrb[0].mxu0
    %v984 = vadd.f32 %v932, %v983
    %v985 = vpop.f32.mrb[0].mxu0
    %v986 = vpop.f32.mrb[0].mxu0
    %v987 = vadd.f32 %v932, %v986
    %v988 = vpop.f32.mrb[0].mxu0
    %989 = vdwg.mxu0
    %990 = vst [vmem:[#allocation2] sm:$0xff] %v984
    %991 = vst [vmem:[#allocation2 + $0x8] sm:$0xff] %v987
    %v992 = vld [vmem:[#allocation2] sm:$0xff]
    %v993 = vpack.c.bf16 %v992, %v992
    %995 = vrot.lane.b32.xlu0 %v993, 96
    %v996 = vpop.permute.xlu0 %995
    %v998 = vsel %vm188, %v993, 0
    %v1001 = vsel %vm188, %v996, 0
    %1003 = vmatprep.subr.bf16.mxu0 0
    %1004 = vmatpush1.bf16.xpose.msra.mxu0 %v1001
    %1005 = vmatprep.subr.bf16.mxu0 0
    %1006 = vmatpush1.bf16.xpose.msra.mxu0 0
    %1007 = vmatprep.subr.bf16.mxu0 0
    %1008 = vmatpush1.bf16.xpose.msra.mxu0 0
    %1009 = vmatprep.subr.bf16.mxu0 0
    %1010 = vmatpush1.bf16.xpose.msra.mxu0 0
    %1011 = vmatprep.subr.bf16.mxu0 0
    %1012 = vmatpush1.bf16.xpose.msra.mxu0 0
    %1013 = vmatprep.subr.bf16.mxu0 0
    %1014 = vmatpush1.bf16.xpose.msra.mxu0 0
    %1015 = vmatprep.subr.bf16.mxu0 0
    %1016 = vmatpush1.bf16.xpose.msra.mxu0 0
    %1017 = vmatprep.subr.bf16.mxu0 0
    %1018 = vmatpush1.bf16.xpose.msra.mxu0 0
    %1019 = vmatprep.subr.bf16.mxu0 0
    %1020 = vmatpush1.bf16.xpose.msra.mxu0 0
    %1021 = vmatprep.subr.bf16.mxu0 0
    %1022 = vmatpush1.bf16.xpose.msra.mxu0 0
    %1023 = vmatprep.subr.bf16.mxu0 0
    %1024 = vmatpush1.bf16.xpose.msra.mxu0 0
    %1025 = vmatprep.subr.bf16.mxu0 0
    %1026 = vmatpush1.bf16.xpose.msra.mxu0 0
    %1027 = vmatprep.subr.bf16.mxu0 0
    %1028 = vmatpush1.bf16.xpose.msra.mxu0 0
    %1029 = vmatprep.subr.bf16.mxu0 0
    %1030 = vmatpush1.bf16.xpose.msra.mxu0 0
    %1031 = vmatprep.subr.bf16.mxu0 0
    %1032 = vmatpush1.bf16.xpose.msra.mxu0 0
    %1033 = vmatprep.subr.bf16.mxu0 0
    %1034 = vmatpush1.bf16.xpose.msra.mxu0 0
    %1035 = vmatprep.mubr.bf16.mxu0 0
    %1036 = vmatmul.mubr.bf16.gmra.mrb[0].mxu0 %v998
    %v1037 = vpop.f32.mrb[0].mxu0
    %v1038 = vadd.f32 0.0, %v1037
    %v1039 = vpop.f32.mrb[0].mxu0
    %v1040 = vpop.f32.mrb[0].mxu0
    %v1041 = vpop.f32.mrb[0].mxu0
    %1042 = vdwg.mxu0
    %v1043 = vmul.f32 %v1038, 0.25
    %v1044 = vadd.f32 %v1043, %v239
    %v1045 = vsel %vm241, %v1044, -inf
    %1046 = vmax.xlane.f32.xlu0 %v1045
    %v1047 = vpop.xlane.xlu0 %1046
    %v1048 = vsub.f32 %v1044, %v1047
    %v1049 = vmul.f32 %v1048, 1.442695
    %v1050 = vpow.pop %v1049
    %v1051 = vsel %vm241, %v1050, 0.0
    %1052 = vadd.xlane.f32.xlu0 %v1051
    %v1053 = vpop.xlane.xlu0 %1052
    %v1054 = vrcp.pop %v1053
    %v1055 = vmul.f32 %v1050, %v1054
    %v1056 = vpack.c.bf16 %v1055, %v1055
    %1057 = vrot.lane.b32.xlu0 %v993, 112
    %v1058 = vpop.permute.xlu0 %1057
    %1059 = vrot.lane.b32.xlu0 %v993, 80
    %v1060 = vpop.permute.xlu0 %1059
    %v1062 = vsel %vm188, %v1058, 0
    %v1065 = vsel %vm188, %v1060, 0
    %1067 = vmatprep.subr.bf16.mxu0 0
    %1068 = vmatpush1.bf16.xpose.msra.mxu0 %v1065
    %1069 = vmatprep.subr.bf16.mxu0 0
    %1070 = vmatpush1.bf16.xpose.msra.mxu0 0
    %1071 = vmatprep.subr.bf16.mxu0 0
    %1072 = vmatpush1.bf16.xpose.msra.mxu0 0
    %1073 = vmatprep.subr.bf16.mxu0 0
    %1074 = vmatpush1.bf16.xpose.msra.mxu0 0
    %1075 = vmatprep.subr.bf16.mxu0 0
    %1076 = vmatpush1.bf16.xpose.msra.mxu0 0
    %1077 = vmatprep.subr.bf16.mxu0 0
    %1078 = vmatpush1.bf16.xpose.msra.mxu0 0
    %1079 = vmatprep.subr.bf16.mxu0 0
    %1080 = vmatpush1.bf16.xpose.msra.mxu0 0
    %1081 = vmatprep.subr.bf16.mxu0 0
    %1082 = vmatpush1.bf16.xpose.msra.mxu0 0
    %1083 = vmatprep.subr.bf16.mxu0 0
    %1084 = vmatpush1.bf16.xpose.msra.mxu0 0
    %1085 = vmatprep.subr.bf16.mxu0 0
    %1086 = vmatpush1.bf16.xpose.msra.mxu0 0
    %1087 = vmatprep.subr.bf16.mxu0 0
    %1088 = vmatpush1.bf16.xpose.msra.mxu0 0
    %1089 = vmatprep.subr.bf16.mxu0 0
    %1090 = vmatpush1.bf16.xpose.msra.mxu0 0
    %1091 = vmatprep.subr.bf16.mxu0 0
    %1092 = vmatpush1.bf16.xpose.msra.mxu0 0
    %1093 = vmatprep.subr.bf16.mxu0 0
    %1094 = vmatpush1.bf16.xpose.msra.mxu0 0
    %1095 = vmatprep.subr.bf16.mxu0 0
    %1096 = vmatpush1.bf16.xpose.msra.mxu0 0
    %1097 = vmatprep.subr.bf16.mxu0 0
    %1098 = vmatpush1.bf16.xpose.msra.mxu0 0
    %1099 = vmatprep.mubr.bf16.mxu0 0
    %1100 = vmatmul.mubr.bf16.gmra.mrb[0].mxu0 %v1062
    %v1101 = vpop.f32.mrb[0].mxu0
    %v1102 = vadd.f32 0.0, %v1101
    %v1103 = vpop.f32.mrb[0].mxu0
    %v1104 = vpop.f32.mrb[0].mxu0
    %v1105 = vpop.f32.mrb[0].mxu0
    %1106 = vdwg.mxu0
    %v1107 = vmul.f32 %v1102, 0.25
    %v1108 = vadd.f32 %v1107, %v239
    %v1109 = vsel %vm241, %v1108, -inf
    %1110 = vmax.xlane.f32.xlu0 %v1109
    %v1111 = vpop.xlane.xlu0 %1110
    %v1112 = vsub.f32 %v1108, %v1111
    %v1113 = vmul.f32 %v1112, 1.442695
    %v1114 = vpow.pop %v1113
    %v1115 = vsel %vm241, %v1114, 0.0
    %1116 = vadd.xlane.f32.xlu0 %v1115
    %v1117 = vpop.xlane.xlu0 %1116
    %v1118 = vrcp.pop %v1117
    %v1119 = vmul.f32 %v1114, %v1118
    %v1120 = vpack.c.bf16 %v1119, %v1119
    %1121 = vrot.lane.b32.xlu0 %v993, 32
    %v1122 = vpop.permute.xlu0 %1121
    %v1124 = vsel %vm241, %v1120, 0
    %v1127 = vsel %vm323, %v1122, 0
    %1129 = vmatprep.subr.bf16.mxu0 0
    %1130 = vmatpush1.bf16.msra.mxu0 %v1127
    %1131 = vmatprep.subr.bf16.mxu0 0
    %1132 = vmatpush1.bf16.msra.mxu0 0
    %1133 = vmatprep.subr.bf16.mxu0 0
    %1134 = vmatpush1.bf16.msra.mxu0 0
    %1135 = vmatprep.subr.bf16.mxu0 0
    %1136 = vmatpush1.bf16.msra.mxu0 0
    %1137 = vmatprep.subr.bf16.mxu0 0
    %1138 = vmatpush1.bf16.msra.mxu0 0
    %1139 = vmatprep.subr.bf16.mxu0 0
    %1140 = vmatpush1.bf16.msra.mxu0 0
    %1141 = vmatprep.subr.bf16.mxu0 0
    %1142 = vmatpush1.bf16.msra.mxu0 0
    %1143 = vmatprep.subr.bf16.mxu0 0
    %1144 = vmatpush1.bf16.msra.mxu0 0
    %1145 = vmatprep.subr.bf16.mxu0 0
    %1146 = vmatpush1.bf16.msra.mxu0 0
    %1147 = vmatprep.subr.bf16.mxu0 0
    %1148 = vmatpush1.bf16.msra.mxu0 0
    %1149 = vmatprep.subr.bf16.mxu0 0
    %1150 = vmatpush1.bf16.msra.mxu0 0
    %1151 = vmatprep.subr.bf16.mxu0 0
    %1152 = vmatpush1.bf16.msra.mxu0 0
    %1153 = vmatprep.subr.bf16.mxu0 0
    %1154 = vmatpush1.bf16.msra.mxu0 0
    %1155 = vmatprep.subr.bf16.mxu0 0
    %1156 = vmatpush1.bf16.msra.mxu0 0
    %1157 = vmatprep.subr.bf16.mxu0 0
    %1158 = vmatpush1.bf16.msra.mxu0 0
    %1159 = vmatprep.subr.bf16.mxu0 0
    %1160 = vmatpush1.bf16.msra.mxu0 0
    %1161 = vmatprep.mubr.bf16.mxu0 0
    %1162 = vmatmul.mubr.bf16.gmra.mrb[0].mxu0 %v1124
    %v1163 = vpop.f32.mrb[0].mxu0
    %v1164 = vadd.f32 0.0, %v1163
    %v1165 = vpop.f32.mrb[0].mxu0
    %v1166 = vpop.f32.mrb[0].mxu0
    %v1167 = vpop.f32.mrb[0].mxu0
    %1168 = vdwg.mxu0
    %1169 = vrot.lane.b32.xlu0 %v993, 64
    %v1170 = vpop.permute.xlu0 %1169
    %v1172 = vsel %vm241, %v1056, 0
    %v1175 = vsel %vm323, %v1170, 0
    %1177 = vmatprep.subr.bf16.mxu0 0
    %1178 = vmatpush1.bf16.msra.mxu0 %v1175
    %1179 = vmatprep.subr.bf16.mxu0 0
    %1180 = vmatpush1.bf16.msra.mxu0 0
    %1181 = vmatprep.subr.bf16.mxu0 0
    %1182 = vmatpush1.bf16.msra.mxu0 0
    %1183 = vmatprep.subr.bf16.mxu0 0
    %1184 = vmatpush1.bf16.msra.mxu0 0
    %1185 = vmatprep.subr.bf16.mxu0 0
    %1186 = vmatpush1.bf16.msra.mxu0 0
    %1187 = vmatprep.subr.bf16.mxu0 0
    %1188 = vmatpush1.bf16.msra.mxu0 0
    %1189 = vmatprep.subr.bf16.mxu0 0
    %1190 = vmatpush1.bf16.msra.mxu0 0
    %1191 = vmatprep.subr.bf16.mxu0 0
    %1192 = vmatpush1.bf16.msra.mxu0 0
    %1193 = vmatprep.subr.bf16.mxu0 0
    %1194 = vmatpush1.bf16.msra.mxu0 0
    %1195 = vmatprep.subr.bf16.mxu0 0
    %1196 = vmatpush1.bf16.msra.mxu0 0
    %1197 = vmatprep.subr.bf16.mxu0 0
    %1198 = vmatpush1.bf16.msra.mxu0 0
    %1199 = vmatprep.subr.bf16.mxu0 0
    %1200 = vmatpush1.bf16.msra.mxu0 0
    %1201 = vmatprep.subr.bf16.mxu0 0
    %1202 = vmatpush1.bf16.msra.mxu0 0
    %1203 = vmatprep.subr.bf16.mxu0 0
    %1204 = vmatpush1.bf16.msra.mxu0 0
    %1205 = vmatprep.subr.bf16.mxu0 0
    %1206 = vmatpush1.bf16.msra.mxu0 0
    %1207 = vmatprep.subr.bf16.mxu0 0
    %1208 = vmatpush1.bf16.msra.mxu0 0
    %1209 = vmatprep.mubr.bf16.mxu0 0
    %1210 = vmatmul.mubr.bf16.gmra.mrb[0].mxu0 %v1172
    %v1211 = vpop.f32.mrb[0].mxu0
    %v1212 = vadd.f32 %v1164, %v1211
    %v1213 = vpop.f32.mrb[0].mxu0
    %v1214 = vpop.f32.mrb[0].mxu0
    %v1215 = vpop.f32.mrb[0].mxu0
    %1216 = vdwg.mxu0
    %1217 = vst.msk [vmem:[#allocation3] sm:$0xff] %vm68, %v1212
    %v1218 = vld [vmem:[#allocation2 + $0x8] sm:$0xff]
    %v1219 = vpack.c.bf16 %v1218, %v1218
    %1221 = vrot.lane.b32.xlu0 %v1219, 96
    %v1222 = vpop.permute.xlu0 %1221
    %v1224 = vsel %vm188, %v1219, 0
    %v1227 = vsel %vm188, %v1222, 0
    %1229 = vmatprep.subr.bf16.mxu0 0
    %1230 = vmatpush1.bf16.xpose.msra.mxu0 %v1227
    %1231 = vmatprep.subr.bf16.mxu0 0
    %1232 = vmatpush1.bf16.xpose.msra.mxu0 0
    %1233 = vmatprep.subr.bf16.mxu0 0
    %1234 = vmatpush1.bf16.xpose.msra.mxu0 0
    %1235 = vmatprep.subr.bf16.mxu0 0
    %1236 = vmatpush1.bf16.xpose.msra.mxu0 0
    %1237 = vmatprep.subr.bf16.mxu0 0
    %1238 = vmatpush1.bf16.xpose.msra.mxu0 0
    %1239 = vmatprep.subr.bf16.mxu0 0
    %1240 = vmatpush1.bf16.xpose.msra.mxu0 0
    %1241 = vmatprep.subr.bf16.mxu0 0
    %1242 = vmatpush1.bf16.xpose.msra.mxu0 0
    %1243 = vmatprep.subr.bf16.mxu0 0
    %1244 = vmatpush1.bf16.xpose.msra.mxu0 0
    %1245 = vmatprep.subr.bf16.mxu0 0
    %1246 = vmatpush1.bf16.xpose.msra.mxu0 0
    %1247 = vmatprep.subr.bf16.mxu0 0
    %1248 = vmatpush1.bf16.xpose.msra.mxu0 0
    %1249 = vmatprep.subr.bf16.mxu0 0
    %1250 = vmatpush1.bf16.xpose.msra.mxu0 0
    %1251 = vmatprep.subr.bf16.mxu0 0
    %1252 = vmatpush1.bf16.xpose.msra.mxu0 0
    %1253 = vmatprep.subr.bf16.mxu0 0
    %1254 = vmatpush1.bf16.xpose.msra.mxu0 0
    %1255 = vmatprep.subr.bf16.mxu0 0
    %1256 = vmatpush1.bf16.xpose.msra.mxu0 0
    %1257 = vmatprep.subr.bf16.mxu0 0
    %1258 = vmatpush1.bf16.xpose.msra.mxu0 0
    %1259 = vmatprep.subr.bf16.mxu0 0
    %1260 = vmatpush1.bf16.xpose.msra.mxu0 0
    %1261 = vmatprep.mubr.bf16.mxu0 0
    %1262 = vmatmul.mubr.bf16.gmra.mrb[0].mxu0 %v1224
    %v1263 = vpop.f32.mrb[0].mxu0
    %v1264 = vadd.f32 0.0, %v1263
    %v1265 = vpop.f32.mrb[0].mxu0
    %v1266 = vpop.f32.mrb[0].mxu0
    %v1267 = vpop.f32.mrb[0].mxu0
    %1268 = vdwg.mxu0
    %v1269 = vmul.f32 %v1264, 0.25
    %v1270 = vadd.f32 %v1269, %v471
    %v1271 = vsel %vm241, %v1270, -inf
    %1272 = vmax.xlane.f32.xlu0 %v1271
    %v1273 = vpop.xlane.xlu0 %1272
    %v1274 = vsub.f32 %v1270, %v1273
    %v1275 = vmul.f32 %v1274, 1.442695
    %v1276 = vpow.pop %v1275
    %v1277 = vsel %vm241, %v1276, 0.0
    %1278 = vadd.xlane.f32.xlu0 %v1277
    %v1279 = vpop.xlane.xlu0 %1278
    %v1280 = vrcp.pop %v1279
    %v1281 = vmul.f32 %v1276, %v1280
    %v1282 = vpack.c.bf16 %v1281, %v1281
    %1283 = vrot.lane.b32.xlu0 %v1219, 112
    %v1284 = vpop.permute.xlu0 %1283
    %1285 = vrot.lane.b32.xlu0 %v1219, 80
    %v1286 = vpop.permute.xlu0 %1285
    %v1288 = vsel %vm188, %v1284, 0
    %v1291 = vsel %vm188, %v1286, 0
    %1293 = vmatprep.subr.bf16.mxu0 0
    %1294 = vmatpush1.bf16.xpose.msra.mxu0 %v1291
    %1295 = vmatprep.subr.bf16.mxu0 0
    %1296 = vmatpush1.bf16.xpose.msra.mxu0 0
    %1297 = vmatprep.subr.bf16.mxu0 0
    %1298 = vmatpush1.bf16.xpose.msra.mxu0 0
    %1299 = vmatprep.subr.bf16.mxu0 0
    %1300 = vmatpush1.bf16.xpose.msra.mxu0 0
    %1301 = vmatprep.subr.bf16.mxu0 0
    %1302 = vmatpush1.bf16.xpose.msra.mxu0 0
    %1303 = vmatprep.subr.bf16.mxu0 0
    %1304 = vmatpush1.bf16.xpose.msra.mxu0 0
    %1305 = vmatprep.subr.bf16.mxu0 0
    %1306 = vmatpush1.bf16.xpose.msra.mxu0 0
    %1307 = vmatprep.subr.bf16.mxu0 0
    %1308 = vmatpush1.bf16.xpose.msra.mxu0 0
    %1309 = vmatprep.subr.bf16.mxu0 0
    %1310 = vmatpush1.bf16.xpose.msra.mxu0 0
    %1311 = vmatprep.subr.bf16.mxu0 0
    %1312 = vmatpush1.bf16.xpose.msra.mxu0 0
    %1313 = vmatprep.subr.bf16.mxu0 0
    %1314 = vmatpush1.bf16.xpose.msra.mxu0 0
    %1315 = vmatprep.subr.bf16.mxu0 0
    %1316 = vmatpush1.bf16.xpose.msra.mxu0 0
    %1317 = vmatprep.subr.bf16.mxu0 0
    %1318 = vmatpush1.bf16.xpose.msra.mxu0 0
    %1319 = vmatprep.subr.bf16.mxu0 0
    %1320 = vmatpush1.bf16.xpose.msra.mxu0 0
    %1321 = vmatprep.subr.bf16.mxu0 0
    %1322 = vmatpush1.bf16.xpose.msra.mxu0 0
    %1323 = vmatprep.subr.bf16.mxu0 0
    %1324 = vmatpush1.bf16.xpose.msra.mxu0 0
    %1325 = vmatprep.mubr.bf16.mxu0 0
    %1326 = vmatmul.mubr.bf16.gmra.mrb[0].mxu0 %v1288
    %v1327 = vpop.f32.mrb[0].mxu0
    %v1328 = vadd.f32 0.0, %v1327
    %v1329 = vpop.f32.mrb[0].mxu0
    %v1330 = vpop.f32.mrb[0].mxu0
    %v1331 = vpop.f32.mrb[0].mxu0
    %1332 = vdwg.mxu0
    %v1333 = vmul.f32 %v1328, 0.25
    %v1334 = vadd.f32 %v1333, %v471
    %v1335 = vsel %vm241, %v1334, -inf
    %1336 = vmax.xlane.f32.xlu0 %v1335
    %v1337 = vpop.xlane.xlu0 %1336
    %v1338 = vsub.f32 %v1334, %v1337
    %v1339 = vmul.f32 %v1338, 1.442695
    %v1340 = vpow.pop %v1339
    %v1341 = vsel %vm241, %v1340, 0.0
    %1342 = vadd.xlane.f32.xlu0 %v1341
    %v1343 = vpop.xlane.xlu0 %1342
    %v1344 = vrcp.pop %v1343
    %v1345 = vmul.f32 %v1340, %v1344
    %v1346 = vpack.c.bf16 %v1345, %v1345
    %1347 = vrot.lane.b32.xlu0 %v1219, 32
    %v1348 = vpop.permute.xlu0 %1347
    %v1350 = vsel %vm241, %v1346, 0
    %v1353 = vsel %vm323, %v1348, 0
    %1355 = vmatprep.subr.bf16.mxu0 0
    %1356 = vmatpush1.bf16.msra.mxu0 %v1353
    %1357 = vmatprep.subr.bf16.mxu0 0
    %1358 = vmatpush1.bf16.msra.mxu0 0
    %1359 = vmatprep.subr.bf16.mxu0 0
    %1360 = vmatpush1.bf16.msra.mxu0 0
    %1361 = vmatprep.subr.bf16.mxu0 0
    %1362 = vmatpush1.bf16.msra.mxu0 0
    %1363 = vmatprep.subr.bf16.mxu0 0
    %1364 = vmatpush1.bf16.msra.mxu0 0
    %1365 = vmatprep.subr.bf16.mxu0 0
    %1366 = vmatpush1.bf16.msra.mxu0 0
    %1367 = vmatprep.subr.bf16.mxu0 0
    %1368 = vmatpush1.bf16.msra.mxu0 0
    %1369 = vmatprep.subr.bf16.mxu0 0
    %1370 = vmatpush1.bf16.msra.mxu0 0
    %1371 = vmatprep.subr.bf16.mxu0 0
    %1372 = vmatpush1.bf16.msra.mxu0 0
    %1373 = vmatprep.subr.bf16.mxu0 0
    %1374 = vmatpush1.bf16.msra.mxu0 0
    %1375 = vmatprep.subr.bf16.mxu0 0
    %1376 = vmatpush1.bf16.msra.mxu0 0
    %1377 = vmatprep.subr.bf16.mxu0 0
    %1378 = vmatpush1.bf16.msra.mxu0 0
    %1379 = vmatprep.subr.bf16.mxu0 0
    %1380 = vmatpush1.bf16.msra.mxu0 0
    %1381 = vmatprep.subr.bf16.mxu0 0
    %1382 = vmatpush1.bf16.msra.mxu0 0
    %1383 = vmatprep.subr.bf16.mxu0 0
    %1384 = vmatpush1.bf16.msra.mxu0 0
    %1385 = vmatprep.subr.bf16.mxu0 0
    %1386 = vmatpush1.bf16.msra.mxu0 0
    %1387 = vmatprep.mubr.bf16.mxu0 0
    %1388 = vmatmul.mubr.bf16.gmra.mrb[0].mxu0 %v1350
    %v1389 = vpop.f32.mrb[0].mxu0
    %v1390 = vadd.f32 0.0, %v1389
    %v1391 = vpop.f32.mrb[0].mxu0
    %v1392 = vpop.f32.mrb[0].mxu0
    %v1393 = vpop.f32.mrb[0].mxu0
    %1394 = vdwg.mxu0
    %1395 = vrot.lane.b32.xlu0 %v1219, 64
    %v1396 = vpop.permute.xlu0 %1395
    %v1398 = vsel %vm241, %v1282, 0
    %v1401 = vsel %vm323, %v1396, 0
    %1403 = vmatprep.subr.bf16.mxu0 0
    %1404 = vmatpush1.bf16.msra.mxu0 %v1401
    %1405 = vmatprep.subr.bf16.mxu0 0
    %1406 = vmatpush1.bf16.msra.mxu0 0
    %1407 = vmatprep.subr.bf16.mxu0 0
    %1408 = vmatpush1.bf16.msra.mxu0 0
    %1409 = vmatprep.subr.bf16.mxu0 0
    %1410 = vmatpush1.bf16.msra.mxu0 0
    %1411 = vmatprep.subr.bf16.mxu0 0
    %1412 = vmatpush1.bf16.msra.mxu0 0
    %1413 = vmatprep.subr.bf16.mxu0 0
    %1414 = vmatpush1.bf16.msra.mxu0 0
    %1415 = vmatprep.subr.bf16.mxu0 0
    %1416 = vmatpush1.bf16.msra.mxu0 0
    %1417 = vmatprep.subr.bf16.mxu0 0
    %1418 = vmatpush1.bf16.msra.mxu0 0
    %1419 = vmatprep.subr.bf16.mxu0 0
    %1420 = vmatpush1.bf16.msra.mxu0 0
    %1421 = vmatprep.subr.bf16.mxu0 0
    %1422 = vmatpush1.bf16.msra.mxu0 0
    %1423 = vmatprep.subr.bf16.mxu0 0
    %1424 = vmatpush1.bf16.msra.mxu0 0
    %1425 = vmatprep.subr.bf16.mxu0 0
    %1426 = vmatpush1.bf16.msra.mxu0 0
    %1427 = vmatprep.subr.bf16.mxu0 0
    %1428 = vmatpush1.bf16.msra.mxu0 0
    %1429 = vmatprep.subr.bf16.mxu0 0
    %1430 = vmatpush1.bf16.msra.mxu0 0
    %1431 = vmatprep.subr.bf16.mxu0 0
    %1432 = vmatpush1.bf16.msra.mxu0 0
    %1433 = vmatprep.subr.bf16.mxu0 0
    %1434 = vmatpush1.bf16.msra.mxu0 0
    %1435 = vmatprep.mubr.bf16.mxu0 0
    %1436 = vmatmul.mubr.bf16.gmra.mrb[0].mxu0 %v1398
    %v1437 = vpop.f32.mrb[0].mxu0
    %v1438 = vadd.f32 %v1390, %v1437
    %v1439 = vpop.f32.mrb[0].mxu0
    %v1440 = vpop.f32.mrb[0].mxu0
    %v1441 = vpop.f32.mrb[0].mxu0
    %1442 = vdwg.mxu0
    %1443 = vst.msk [vmem:[#allocation3 + $0x8] sm:$0xff] %vm68, %v1438
    %v1444 = vld [vmem:[#allocation3] sm:$0xff]
    %v1445 = vld [vmem:[#allocation3 + $0x8] sm:$0xff]
    %s1446 = scalar_lea.vmem %s6, 1
    %v1447 = vld [vmem:[%s1446] sm:$0x1]
    %v1449 = vlaneseq
    %v1450 = vshrl.u32 %v1449, 7
    %v1451 = vsub.s32 0, %v1450
    %v1452 = vrot.slane %v1447, %v1451
    %v1454 = vadd.f32 %v1444, %v1452
    %v1455 = vadd.f32 %v1445, %v1452
    %v1456 = vadd.f32 %v1454, %v918
    %v1457 = vadd.f32 %v1455, %v919
    %s1458 = scalar_lea.vmem %s7, 1
    %v1459 = vld [vmem:[%s1458] sm:$0x1]
    %s1460 = scalar_lea.vmem %s8, 1
    %v1461 = vld [vmem:[%s1460] sm:$0x1]
    %v1462 = vsel %vm68, %v1456, 0.0
    %1463 = vadd.xlane.f32.xlu0 %v1462
    %v1464 = vpop.xlane.xlu0 %1463
    %v1465 = vsel %vm68, %v1457, 0.0
    %1466 = vadd.xlane.f32.xlu0 %v1465
    %v1467 = vpop.xlane.xlu0 %1466
    %v1468 = vmul.f32 %v1464, %v75
    %v1469 = vmul.f32 %v1467, %v75
    %v1470 = vsub.f32 %v1456, %v1468
    %v1471 = vsub.f32 %v1457, %v1469
    %v1472 = vmul.f32 %v1470, %v1470
    %v1473 = vmul.f32 %v1471, %v1471
    %v1474 = vsel %vm68, %v1472, 0.0
    %1475 = vadd.xlane.f32.xlu0 %v1474
    %v1476 = vpop.xlane.xlu0 %1475
    %v1477 = vsel %vm68, %v1473, 0.0
    %1478 = vadd.xlane.f32.xlu0 %v1477
    %v1479 = vpop.xlane.xlu0 %1478
    %v1480 = vmul.f32 %v1476, %v75
    %v1481 = vmul.f32 %v1479, %v75
    %v1482 = vadd.f32 %v1480, 1e-12
    %v1483 = vadd.f32 %v1481, 1e-12
    %v1484 = vrsqrt.pop %v1482
    %v1485 = vrsqrt.pop %v1483
    %v1486 = vmul.f32 %v1470, %v1484
    %v1487 = vmul.f32 %v1471, %v1485
    %v1489 = vlaneseq
    %v1490 = vshrl.u32 %v1489, 7
    %v1491 = vsub.s32 0, %v1490
    %v1492 = vrot.slane %v1459, %v1491
    %v1494 = vmul.f32 %v1486, %v1492
    %v1495 = vmul.f32 %v1487, %v1492
    %v1497 = vlaneseq
    %v1498 = vshrl.u32 %v1497, 7
    %v1499 = vsub.s32 0, %v1498
    %v1500 = vrot.slane %v1461, %v1499
    %v1502 = vadd.f32 %v1494, %v1500
    %v1503 = vadd.f32 %v1495, %v1500
    %v1504 = vpack.c.bf16 %v1503, %v1502
    %s1505 = scalar_lea.vmem %s9, 16
    %v1506 = vld [vmem:[%s1505] sm:$0xf]
    %v1507 = vld [vmem:[%s1505 + $0x4] sm:$0xf]
    %v1508 = vld [vmem:[%s1505 + $0x8] sm:$0xf]
    %v1509 = vld [vmem:[%s1505 + $0xc] sm:$0xf]
    %s1510 = scalar_lea.vmem %s10, 1
    %v1511 = vld [vmem:[%s1510] sm:$0x1]
    %v1513 = vlaneseq
    %v1514 = vshrl.u32 %v1513, 7
    %v1515 = vsub.s32 0, %v1514
    %v1516 = vrot.slane %v1511, %v1515
    %v1522 = vunpack.c.l.b16 %v1506
    %v1523 = vunpack.c.l.b16 %v1507
    %v1524 = vunpack.c.l.b16 %v1508
    %v1525 = vunpack.c.l.b16 %v1509
    %v1526 = vpack.c.b16 %v1523, %v1522
    %v1527 = vpack.c.b16 %v1525, %v1524
    %v1531 = vsel %vm68, %v1504, 0
    %1533 = vmatprep.subr.bf16.mxu0 0
    %1534 = vmatpush1.bf16.msra.mxu0 %v1526
    %1535 = vmatprep.subr.bf16.mxu0 0
    %1536 = vmatpush1.bf16.msra.mxu0 %v1527
    %1537 = vmatprep.subr.bf16.mxu0 0
    %1538 = vmatpush1.bf16.msra.mxu0 0
    %1539 = vmatprep.subr.bf16.mxu0 0
    %1540 = vmatpush1.bf16.msra.mxu0 0
    %1541 = vmatprep.subr.bf16.mxu0 0
    %1542 = vmatpush1.bf16.msra.mxu0 0
    %1543 = vmatprep.subr.bf16.mxu0 0
    %1544 = vmatpush1.bf16.msra.mxu0 0
    %1545 = vmatprep.subr.bf16.mxu0 0
    %1546 = vmatpush1.bf16.msra.mxu0 0
    %1547 = vmatprep.subr.bf16.mxu0 0
    %1548 = vmatpush1.bf16.msra.mxu0 0
    %1549 = vmatprep.subr.bf16.mxu0 0
    %1550 = vmatpush1.bf16.msra.mxu0 0
    %1551 = vmatprep.subr.bf16.mxu0 0
    %1552 = vmatpush1.bf16.msra.mxu0 0
    %1553 = vmatprep.subr.bf16.mxu0 0
    %1554 = vmatpush1.bf16.msra.mxu0 0
    %1555 = vmatprep.subr.bf16.mxu0 0
    %1556 = vmatpush1.bf16.msra.mxu0 0
    %1557 = vmatprep.subr.bf16.mxu0 0
    %1558 = vmatpush1.bf16.msra.mxu0 0
    %1559 = vmatprep.subr.bf16.mxu0 0
    %1560 = vmatpush1.bf16.msra.mxu0 0
    %1561 = vmatprep.subr.bf16.mxu0 0
    %1562 = vmatpush1.bf16.msra.mxu0 0
    %1563 = vmatprep.subr.bf16.mxu0 0
    %1564 = vmatpush1.bf16.msra.mxu0 0
    %1565 = vmatprep.mubr.bf16.mxu0 0
    %1566 = vmatmul.mubr.bf16.gmra.mrb[0].mxu0 %v1531
    %v1567 = vpop.f32.mrb[0].mxu0
    %v1568 = vadd.f32 %v1516, %v1567
    %v1569 = vpop.f32.mrb[0].mxu0
    %v1570 = vpop.f32.mrb[0].mxu0
    %v1571 = vadd.f32 %v1516, %v1570
    %v1572 = vpop.f32.mrb[0].mxu0
    %1573 = vdwg.mxu0
    %v1574 = vmul.f32 %v1568, 0.5
    %v1575 = vmul.f32 %v1571, 0.5
    %v1576 = vmul.f32 %v1568, 0.044715
    %v1577 = vmul.f32 %v1571, 0.044715
    %v1578 = vmul.f32 %v1576, %v1568
    %v1579 = vmul.f32 %v1577, %v1571
    %v1580 = vmul.f32 %v1578, %v1568
    %v1581 = vmul.f32 %v1579, %v1571
    %v1582 = vadd.f32 %v1568, %v1580
    %v1583 = vadd.f32 %v1571, %v1581
    %v1584 = vmul.f32 %v1582, 0.7978846
    %v1585 = vmul.f32 %v1583, 0.7978846
    %v1586 = vtanh.pop %v1584
    %v1587 = vtanh.pop %v1585
    %v1588 = vadd.f32 %v1586, 1.0
    %v1589 = vadd.f32 %v1587, 1.0
    %v1590 = vmul.f32 %v1574, %v1588
    %v1591 = vmul.f32 %v1575, %v1589
    %v1592 = vpack.c.bf16 %v1591, %v1590
    %s1593 = scalar_lea.vmem %s11, 32
    %v1594 = vld [vmem:[%s1593] sm:$0xf]
    %v1595 = vld [vmem:[%s1593 + $0x4] sm:$0xf]
    %v1596 = vld [vmem:[%s1593 + $0x8] sm:$0xf]
    %v1597 = vld [vmem:[%s1593 + $0xc] sm:$0xf]
    %v1598 = vld [vmem:[%s1593 + $0x10] sm:$0xf]
    %v1599 = vld [vmem:[%s1593 + $0x14] sm:$0xf]
    %v1600 = vld [vmem:[%s1593 + $0x18] sm:$0xf]
    %v1601 = vld [vmem:[%s1593 + $0x1c] sm:$0xf]
    %s1602 = scalar_lea.vmem %s12, 1
    %v1603 = vld [vmem:[%s1602] sm:$0x1]
    %v1605 = vlaneseq
    %v1606 = vshrl.u32 %v1605, 7
    %v1607 = vsub.s32 0, %v1606
    %v1608 = vrot.slane %v1603, %v1607
    %v1618 = vunpack.c.l.b16 %v1594
    %v1619 = vunpack.c.l.b16 %v1595
    %v1620 = vunpack.c.l.b16 %v1596
    %v1621 = vunpack.c.l.b16 %v1597
    %v1622 = vunpack.c.l.b16 %v1598
    %v1623 = vunpack.c.l.b16 %v1599
    %v1624 = vunpack.c.l.b16 %v1600
    %v1625 = vunpack.c.l.b16 %v1601
    %v1626 = vpack.c.b16 %v1619, %v1618
    %v1627 = vpack.c.b16 %v1621, %v1620
    %v1628 = vpack.c.b16 %v1623, %v1622
    %v1629 = vpack.c.b16 %v1625, %v1624
    %v1635 = vsel %vm829, %v1592, 0
    %1637 = vmatprep.subr.bf16.mxu0 0
    %1638 = vmatpush1.bf16.msra.mxu0 %v1626
    %1639 = vmatprep.subr.bf16.mxu0 0
    %1640 = vmatpush1.bf16.msra.mxu0 %v1627
    %1641 = vmatprep.subr.bf16.mxu0 0
    %1642 = vmatpush1.bf16.msra.mxu0 %v1628
    %1643 = vmatprep.subr.bf16.mxu0 0
    %1644 = vmatpush1.bf16.msra.mxu0 %v1629
    %1645 = vmatprep.subr.bf16.mxu0 0
    %1646 = vmatpush1.bf16.msra.mxu0 0
    %1647 = vmatprep.subr.bf16.mxu0 0
    %1648 = vmatpush1.bf16.msra.mxu0 0
    %1649 = vmatprep.subr.bf16.mxu0 0
    %1650 = vmatpush1.bf16.msra.mxu0 0
    %1651 = vmatprep.subr.bf16.mxu0 0
    %1652 = vmatpush1.bf16.msra.mxu0 0
    %1653 = vmatprep.subr.bf16.mxu0 0
    %1654 = vmatpush1.bf16.msra.mxu0 0
    %1655 = vmatprep.subr.bf16.mxu0 0
    %1656 = vmatpush1.bf16.msra.mxu0 0
    %1657 = vmatprep.subr.bf16.mxu0 0
    %1658 = vmatpush1.bf16.msra.mxu0 0
    %1659 = vmatprep.subr.bf16.mxu0 0
    %1660 = vmatpush1.bf16.msra.mxu0 0
    %1661 = vmatprep.subr.bf16.mxu0 0
    %1662 = vmatpush1.bf16.msra.mxu0 0
    %1663 = vmatprep.subr.bf16.mxu0 0
    %1664 = vmatpush1.bf16.msra.mxu0 0
    %1665 = vmatprep.subr.bf16.mxu0 0
    %1666 = vmatpush1.bf16.msra.mxu0 0
    %1667 = vmatprep.subr.bf16.mxu0 0
    %1668 = vmatpush1.bf16.msra.mxu0 0
    %1669 = vmatprep.mubr.bf16.mxu0 0
    %1670 = vmatmul.mubr.bf16.gmra.mrb[0].mxu0 %v1635
    %v1671 = vpop.f32.mrb[0].mxu0
    %v1672 = vadd.f32 %v1608, %v1671
    %v1673 = vpop.f32.mrb[0].mxu0
    %v1674 = vpop.f32.mrb[0].mxu0
    %v1675 = vadd.f32 %v1608, %v1674
    %v1676 = vpop.f32.mrb[0].mxu0
    %1677 = vdwg.mxu0
    %v1678 = vadd.f32 %v1672, %v1502
    %v1679 = vadd.f32 %v1675, %v1503
    %s1680 = scalar_lea.vmem %s13, 1
    %v1681 = vld [vmem:[%s1680] sm:$0x1]
    %s1682 = scalar_lea.vmem %s14, 1
    %v1683 = vld [vmem:[%s1682] sm:$0x1]
    %v1684 = vsel %vm68, %v1678, 0.0
    %1685 = vadd.xlane.f32.xlu0 %v1684
    %v1686 = vpop.xlane.xlu0 %1685
    %v1687 = vsel %vm68, %v1679, 0.0
    %1688 = vadd.xlane.f32.xlu0 %v1687
    %v1689 = vpop.xlane.xlu0 %1688
    %v1690 = vmul.f32 %v1686, %v75
    %v1691 = vmul.f32 %v1689, %v75
    %v1692 = vsub.f32 %v1678, %v1690
    %v1693 = vsub.f32 %v1679, %v1691
    %v1694 = vmul.f32 %v1692, %v1692
    %v1695 = vmul.f32 %v1693, %v1693
    %v1696 = vsel %vm68, %v1694, 0.0
    %1697 = vadd.xlane.f32.xlu0 %v1696
    %v1698 = vpop.xlane.xlu0 %1697
    %v1699 = vsel %vm68, %v1695, 0.0
    %1700 = vadd.xlane.f32.xlu0 %v1699
    %v1701 = vpop.xlane.xlu0 %1700
    %v1702 = vmul.f32 %v1698, %v75
    %v1703 = vmul.f32 %v1701, %v75
    %v1704 = vadd.f32 %v1702, 1e-12
    %v1705 = vadd.f32 %v1703, 1e-12
    %v1706 = vrsqrt.pop %v1704
    %v1707 = vrsqrt.pop %v1705
    %v1708 = vmul.f32 %v1692, %v1706
    %v1709 = vmul.f32 %v1693, %v1707
    %v1711 = vlaneseq
    %v1712 = vshrl.u32 %v1711, 7
    %v1713 = vsub.s32 0, %v1712
    %v1714 = vrot.slane %v1681, %v1713
    %v1716 = vmul.f32 %v1708, %v1714
    %v1717 = vmul.f32 %v1709, %v1714
    %v1719 = vlaneseq
    %v1720 = vshrl.u32 %v1719, 7
    %v1721 = vsub.s32 0, %v1720
    %v1722 = vrot.slane %v1683, %v1721
    %v1724 = vadd.f32 %v1716, %v1722
    %v1725 = vadd.f32 %v1717, %v1722
    %v1727 = vrot.slane %v1725, 7
    %vm1729 = vcmask 1040384
    %v1730 = vsel %vm1729, %v1724, %v1727
    %v1731 = vpack.c.bf16 %v1730, %v1730
    %v1732 = vld [vmem:[%s15] sm:$0xf]
    %v1733 = vld [vmem:[%s15 + $0x4] sm:$0xf]
    %v1734 = vld [vmem:[%s15 + $0x8] sm:$0xf]
    %v1735 = vld [vmem:[%s15 + $0xc] sm:$0xf]
    %v1736 = vld [vmem:[%s16] sm:$0x1]
    %v1738 = vlaneseq
    %v1739 = vshrl.u32 %v1738, 7
    %v1740 = vsub.s32 0, %v1739
    %v1741 = vrot.slane %v1736, %v1740
    %v1747 = vunpack.c.l.b16 %v1732
    %v1748 = vunpack.c.l.b16 %v1733
    %v1749 = vunpack.c.l.b16 %v1734
    %v1750 = vunpack.c.l.b16 %v1735
    %v1751 = vpack.c.b16 %v1748, %v1747
    %v1752 = vpack.c.b16 %v1750, %v1749
    %v1756 = vsel %vm68, %v1731, 0
    %1758 = vmatprep.subr.bf16.mxu0 0
    %1759 = vmatpush1.bf16.msra.mxu0 %v1751
    %1760 = vmatprep.subr.bf16.mxu0 0
    %1761 = vmatpush1.bf16.msra.mxu0 %v1752
    %1762 = vmatprep.subr.bf16.mxu0 0
    %1763 = vmatpush1.bf16.msra.mxu0 0
    %1764 = vmatprep.subr.bf16.mxu0 0
    %1765 = vmatpush1.bf16.msra.mxu0 0
    %1766 = vmatprep.subr.bf16.mxu0 0
    %1767 = vmatpush1.bf16.msra.mxu0 0
    %1768 = vmatprep.subr.bf16.mxu0 0
    %1769 = vmatpush1.bf16.msra.mxu0 0
    %1770 = vmatprep.subr.bf16.mxu0 0
    %1771 = vmatpush1.bf16.msra.mxu0 0
    %1772 = vmatprep.subr.bf16.mxu0 0
    %1773 = vmatpush1.bf16.msra.mxu0 0
    %1774 = vmatprep.subr.bf16.mxu0 0
    %1775 = vmatpush1.bf16.msra.mxu0 0
    %1776 = vmatprep.subr.bf16.mxu0 0
    %1777 = vmatpush1.bf16.msra.mxu0 0
    %1778 = vmatprep.subr.bf16.mxu0 0
    %1779 = vmatpush1.bf16.msra.mxu0 0
    %1780 = vmatprep.subr.bf16.mxu0 0
    %1781 = vmatpush1.bf16.msra.mxu0 0
    %1782 = vmatprep.subr.bf16.mxu0 0
    %1783 = vmatpush1.bf16.msra.mxu0 0
    %1784 = vmatprep.subr.bf16.mxu0 0
    %1785 = vmatpush1.bf16.msra.mxu0 0
    %1786 = vmatprep.subr.bf16.mxu0 0
    %1787 = vmatpush1.bf16.msra.mxu0 0
    %1788 = vmatprep.subr.bf16.mxu0 0
    %1789 = vmatpush1.bf16.msra.mxu0 0
    %1790 = vmatprep.mubr.bf16.mxu0 0
    %1791 = vmatmul.mubr.bf16.gmra.mrb[0].mxu0 %v1756
    %v1792 = vpop.f32.mrb[0].mxu0
    %v1793 = vadd.f32 %v1741, %v1792
    %v1794 = vpop.f32.mrb[0].mxu0
    %v1795 = vpop.f32.mrb[0].mxu0
    %v1796 = vpop.f32.mrb[0].mxu0
    %1797 = vdwg.mxu0
    %v1798 = vtanh.pop %v1793
    %v1799 = vpack.c.bf16 %v1798, %v1798
    %v1800 = vld [vmem:[%s17] sm:$0xf]
    %v1801 = vld [vmem:[%s17 + $0x4] sm:$0xf]
    %v1802 = vld [vmem:[%s17 + $0x8] sm:$0xf]
    %v1803 = vld [vmem:[%s17 + $0xc] sm:$0xf]
    %v1804 = vld [vmem:[%s18] sm:$0x1]
    %v1806 = vlaneseq
    %v1807 = vshrl.u32 %v1806, 7
    %v1808 = vsub.s32 0, %v1807
    %v1809 = vrot.slane %v1804, %v1808
    %v1815 = vunpack.c.l.b16 %v1800
    %v1816 = vunpack.c.l.b16 %v1801
    %v1817 = vunpack.c.l.b16 %v1802
    %v1818 = vunpack.c.l.b16 %v1803
    %v1819 = vpack.c.b16 %v1816, %v1815
    %v1820 = vpack.c.b16 %v1818, %v1817
    %v1824 = vsel %vm68, %v1799, 0
    %1826 = vmatprep.subr.bf16.mxu0 0
    %1827 = vmatpush1.bf16.msra.mxu0 %v1819
    %1828 = vmatprep.subr.bf16.mxu0 0
    %1829 = vmatpush1.bf16.msra.mxu0 %v1820
    %1830 = vmatprep.subr.bf16.mxu0 0
    %1831 = vmatpush1.bf16.msra.mxu0 0
    %1832 = vmatprep.subr.bf16.mxu0 0
    %1833 = vmatpush1.bf16.msra.mxu0 0
    %1834 = vmatprep.subr.bf16.mxu0 0
    %1835 = vmatpush1.bf16.msra.mxu0 0
    %1836 = vmatprep.subr.bf16.mxu0 0
    %1837 = vmatpush1.bf16.msra.mxu0 0
    %1838 = vmatprep.subr.bf16.mxu0 0
    %1839 = vmatpush1.bf16.msra.mxu0 0
    %1840 = vmatprep.subr.bf16.mxu0 0
    %1841 = vmatpush1.bf16.msra.mxu0 0
    %1842 = vmatprep.subr.bf16.mxu0 0
    %1843 = vmatpush1.bf16.msra.mxu0 0
    %1844 = vmatprep.subr.bf16.mxu0 0
    %1845 = vmatpush1.bf16.msra.mxu0 0
    %1846 = vmatprep.subr.bf16.mxu0 0
    %1847 = vmatpush1.bf16.msra.mxu0 0
    %1848 = vmatprep.subr.bf16.mxu0 0
    %1849 = vmatpush1.bf16.msra.mxu0 0
    %1850 = vmatprep.subr.bf16.mxu0 0
    %1851 = vmatpush1.bf16.msra.mxu0 0
    %1852 = vmatprep.subr.bf16.mxu0 0
    %1853 = vmatpush1.bf16.msra.mxu0 0
    %1854 = vmatprep.subr.bf16.mxu0 0
    %1855 = vmatpush1.bf16.msra.mxu0 0
    %1856 = vmatprep.subr.bf16.mxu0 0
    %1857 = vmatpush1.bf16.msra.mxu0 0
    %1858 = vmatprep.mubr.bf16.mxu0 0
    %1859 = vmatmul.mubr.bf16.gmra.mrb[0].mxu0 %v1824
    %v1860 = vpop.f32.mrb[0].mxu0
    %v1861 = vadd.f32 %v1809, %v1860
    %v1862 = vpop.f32.mrb[0].mxu0
    %v1863 = vpop.f32.mrb[0].mxu0
    %v1864 = vpop.f32.mrb[0].mxu0
    %1865 = vdwg.mxu0
    %1866 = vst [vmem:[#allocation4] sm:$0x3] %v1861
    // Predicated region
    $region78: #{sentiment_classifier_forward.1} parent=1 // pred_check
      _
    $region79: #{sentiment_classifier_forward.1} parent=1 // pred_check_branch
      %1868 = sbr.rel (0) target = $region81
    $region80: #{sentiment_classifier_forward.1} parent=1 // pred_region
      %s1870 = ssub.s32 32, 32
      %1871 = vsyncadd [#allocation5], %s1870
      %s1873 = sshll.u32 [#allocation4], 4
      %s1874 = int_to_ptr.vmem [resolvable:$true] %s1873
      %1876 = dma.vmem_to_hbm [thread:$0]  %s1874, 32, %s19, [#allocation5]
    $region81: #{sentiment_classifier_forward.1} parent=1 // pred_fallthru
      _
    // Predicated region
    $region82: #{sentiment_classifier_forward.1} parent=1 // pred_check
      _
    $region83: #{sentiment_classifier_forward.1} parent=1 // pred_check_branch
      %1878 = sbr.rel (0) target = $region85
    $region84: #{sentiment_classifier_forward.1} parent=1 // pred_region
      %1879 = dma.done [#allocation5], 32
    $region85: #{sentiment_classifier_forward.1} parent=1 // pred_fallthru
      _
    %1880 = vsyncpa [#allocation5], 1

</llo_original>
